<compile_context>
chip_gen: v5e
topology: v5e:2x2
jax: 0.10.0
libtpu: 0.0.40
codegen_flags: <defaults>
</compile_context>

<pallas_src>
import jax
import jax.numpy as jnp
from jax.experimental import pallas as pl
from jax.experimental.pallas import tpu as pltpu


_VMEM_LIMIT = 32 * 1024 * 1024  # fits default scoped limit on v6e/v7x, < v5e's 128 MiB


def _ceil_to(x, m):
    return ((x + m - 1) // m) * m


# ----------------------------------------------------------------------------
# Kernel 1: fused conv-as-matmul   out = relu(W @ P + b)
#   W: (O, K) bf16, P: (K, TN) bf16, b: (O, 1) f32, out: (O, TN) bf16
#   Lane (last) dim of the output is the spatial axis -> lane-dense stores.
# ----------------------------------------------------------------------------
def _conv_matmul_kernel(w_ref, p_ref, b_ref, o_ref):
    y = jnp.dot(w_ref[...], p_ref[...], preferred_element_type=jnp.float32)
    y = y + b_ref[...]                      # (O, 1) f32, broadcasts over lanes
    o_ref[...] = jnp.maximum(y, 0.0).astype(o_ref.dtype)


def conv_matmul(w_mat, patches_t, bias, *, tn=1024):
    """w_mat: (O, K) bf16, patches_t: (K, M) bf16, bias: (O, 1) f32 -> (O, M) bf16."""
    O, K = w_mat.shape
    M = patches_t.shape[1]
    tn = min(tn, _ceil_to(M, 128))          # lane-tile, multiple of 128
    grid = (pl.cdiv(M, tn),)
    return pl.pallas_call(
        _conv_matmul_kernel,
        out_shape=jax.ShapeDtypeStruct((O, M), jnp.bfloat16),
        grid=grid,
        in_specs=[
            pl.BlockSpec((O, K), lambda i: (0, 0)),   # weights resident
            pl.BlockSpec((K, tn), lambda i: (0, i)),  # spatial tile, pipelined
            pl.BlockSpec((O, 1), lambda i: (0, 0)),   # bias resident
        ],
        out_specs=pl.BlockSpec((O, tn), lambda i: (0, i)),
        compiler_params=pltpu.CompilerParams(
            dimension_semantics=("parallel",),        # megacore on v7x, no-op v5e/v6e
            vmem_limit_bytes=_VMEM_LIMIT,
        ),
    )(w_mat, patches_t, bias)


# ----------------------------------------------------------------------------
# Kernel 2: fused fc + head + softmax
#   probs = softmax(relu(x @ W1 + b1) @ W2 + b2), intermediate stays in vregs.
# ----------------------------------------------------------------------------
def _mlp_head_kernel(x_ref, w1_ref, b1_ref, w2_ref, b2_ref, o_ref):
    h = jnp.dot(x_ref[...], w1_ref[...], preferred_element_type=jnp.float32)
    h = jnp.maximum(h + b1_ref[...], 0.0)               # f32 elementwise (v5e-safe)
    logits = jnp.dot(h.astype(w2_ref.dtype), w2_ref[...],
                     preferred_element_type=jnp.float32)
    logits = logits + b2_ref[...]
    m = jnp.max(logits, axis=-1, keepdims=True)
    e = jnp.exp(logits - m)
    inv = pl.reciprocal(jnp.sum(e, axis=-1, keepdims=True), approx=True)
    o_ref[...] = (e * inv).astype(o_ref.dtype)


def mlp_head(x, w1, b1, w2, b2, *, tm=256):
    """x: (B, K1) bf16, w1: (K1, H) bf16, b1: (1, H) f32,
    w2: (H, A) bf16, b2: (1, A) f32 -> softmax probs (B, A) f32."""
    B, K1 = x.shape
    H = w1.shape[1]
    A = w2.shape[1]
    tm = B if B <= tm else tm               # full-extent block if batch is small
    grid = (pl.cdiv(B, tm),)
    return pl.pallas_call(
        _mlp_head_kernel,
        out_shape=jax.ShapeDtypeStruct((B, A), jnp.float32),
        grid=grid,
        in_specs=[
            pl.BlockSpec((tm, K1), lambda i: (i, 0)),
            pl.BlockSpec((K1, H), lambda i: (0, 0)),
            pl.BlockSpec((1, H), lambda i: (0, 0)),
            pl.BlockSpec((H, A), lambda i: (0, 0)),
            pl.BlockSpec((1, A), lambda i: (0, 0)),
        ],
        out_specs=pl.BlockSpec((tm, A), lambda i: (i, 0)),
        compiler_params=pltpu.CompilerParams(
            dimension_semantics=("parallel",),
            vmem_limit_bytes=_VMEM_LIMIT,
        ),
    )(x, w1, b1, w2, b2)


# ----------------------------------------------------------------------------
# Glue: im2col on a channel-major (C, B, H, W) tensor.
# Rows ordered (c, kh, kw) to match PyTorch weight.view(O, -1); columns (b, oh, ow).
# ----------------------------------------------------------------------------
def im2col_cbhw(x, kh, kw, stride):
    C, B, H, W = x.shape
    OH = (H - kh) // stride + 1
    OW = (W - kw) // stride + 1
    cols = []
    for i in range(kh):
        for j in range(kw):
            cols.append(x[:, :, i:i + stride * OH:stride, j:j + stride * OW:stride])
    patches = jnp.stack(cols, axis=1)                   # (C, kh*kw, B, OH, OW)
    patches = patches.reshape(C * kh * kw, B * OH * OW)
    return patches, OH, OW


def conv2d_relu(x_cbhw, w_mat, bias, kh, kw, stride):
    """x_cbhw: (C, B, H, W) bf16 -> relu(conv(x)) as (O, B, OH, OW) bf16."""
    _, B, _, _ = x_cbhw.shape
    # TODO(synk): fuse im2col into the Pallas kernel (index_map over overlapping
    # input rows / manual DMA) to avoid materializing the ~4x-expanded patch matrix.
    patches, OH, OW = im2col_cbhw(x_cbhw, kh, kw, stride)
    y = conv_matmul(w_mat, patches, bias)               # (O, B*OH*OW)
    return y.reshape(-1, B, OH, OW)


# ----------------------------------------------------------------------------
# Model
# ----------------------------------------------------------------------------
def init_params(key, channels, num_actions):
    """PyTorch-layout parameters (same uniform fan-in init family as nn.Conv2d/Linear)."""
    ks = jax.random.split(key, 8)

    def u(k, shape, fan_in):
        bound = 1.0 / jnp.sqrt(fan_in)
        return jax.random.uniform(k, shape, jnp.float32, -bound, bound)

    p = {}
    p["conv1_w"] = u(ks[0], (16, channels, 8, 8), channels * 8 * 8)
    p["conv1_b"] = u(ks[1], (16,), channels * 8 * 8)
    p["conv2_w"] = u(ks[2], (32, 16, 4, 4), 16 * 4 * 4)
    p["conv2_b"] = u(ks[3], (32,), 16 * 4 * 4)
    p["fc_w"] = u(ks[4], (128, 32 * 8 * 8), 32 * 8 * 8)   # PyTorch (out, in)
    p["fc_b"] = u(ks[5], (128,), 32 * 8 * 8)
    p["head_w"] = u(ks[6], (num_actions, 128), 128)
    p["head_b"] = u(ks[7], (num_actions,), 128)
    return p


def prepare_params(p):
    """One-time repack: matmul-ready layouts, bf16 MXU operands, f32 biases.
    (No per-forward .T / .reshape transposes of static weights.)"""
    O1 = p["conv1_w"].shape[0]
    O2 = p["conv2_w"].shape[0]
    q = {}
    q["conv1_wm"] = p["conv1_w"].reshape(O1, -1).astype(jnp.bfloat16)   # (16, C*64)
    q["conv1_b"] = p["conv1_b"].reshape(O1, 1).astype(jnp.float32)
    q["conv2_wm"] = p["conv2_w"].reshape(O2, -1).astype(jnp.bfloat16)   # (32, 256)
    q["conv2_b"] = p["conv2_b"].reshape(O2, 1).astype(jnp.float32)
    q["fc_w"] = p["fc_w"].T.astype(jnp.bfloat16)                        # (2048, 128)
    q["fc_b"] = p["fc_b"].reshape(1, -1).astype(jnp.float32)
    q["head_w"] = p["head_w"].T.astype(jnp.bfloat16)                    # (128, A)
    q["head_b"] = p["head_b"].reshape(1, -1).astype(jnp.float32)
    return q


@jax.jit
def reinforce_atari_forward(prep, x):
    """x: (B, C, 80, 80) NCHW f32 -> (B, num_actions) softmax probabilities."""
    B = x.shape[0]
    # Channel-major activation layout (C, B, H, W): im2col needs no transpose and
    # the lane-dense conv matmul output (O, B*OH*OW) IS the next layer's layout.
    xc = jnp.transpose(x, (1, 0, 2, 3)).astype(jnp.bfloat16)
    h1 = conv2d_relu(xc, prep["conv1_wm"], prep["conv1_b"], 8, 8, 4)    # (16,B,19,19)
    h2 = conv2d_relu(h1, prep["conv2_wm"], prep["conv2_b"], 4, 4, 2)    # (32,B,8,8)
    O2 = h2.shape[0]
    # (32,B,8,8) -> (B, 32*8*8): matches torch x.view(B,-1) (c,h,w) flattening.
    flat = jnp.transpose(h2.reshape(O2, B, -1), (1, 0, 2)).reshape(B, -1)
    return mlp_head(flat, prep["fc_w"], prep["fc_b"],
                    prep["head_w"], prep["head_b"])                     # (B, A) f32


if __name__ == "__main__":
    key = jax.random.PRNGKey(0)
    kp, kx = jax.random.split(key)

    batch, channels, num_actions = 2, 4, 6
    # Spatial size must be 80: conv1(k=8,s=4) -> 19, conv2(k=4,s=2) -> 8, matching
    # the hardcoded fc input size 32*8*8 in the PyTorch module.
    x = jax.random.normal(kx, (batch, channels, 80, 80), jnp.float32)

    params = init_params(kp, channels, num_actions)
    prep = prepare_params(params)

    out = reinforce_atari_forward(prep, x)
    out = jax.block_until_ready(out)

    assert out.shape == (batch, num_actions)
    # approx=True reciprocal in the softmax -> rows sum to 1 within EUP approx error.
    assert jnp.allclose(jnp.sum(out, axis=-1), 1.0, atol=5e-3)
    assert bool(jnp.all(out >= 0.0))
    print("KERNEL_OK")
</pallas_src>

<mosaic_0001>
module attributes {stable_mosaic.version = 11 : i64} {
  func.func @_conv_matmul_kernel(%arg0: i32, %arg1: memref<16x256xbf16, #tpu.memory_space<vmem>>, %arg2: memref<256x768xbf16, #tpu.memory_space<vmem>>, %arg3: memref<16x1xf32, #tpu.memory_space<vmem>>, %arg4: memref<16x768xbf16, #tpu.memory_space<vmem>>) attributes {dimension_semantics = [#tpu.dimension_semantics<parallel>], iteration_bounds = array<i64: 1>, scalar_prefetch = 0 : i64, scratch_operands = 0 : i64, tpu.core_type = #tpu.core_type<tc>, window_params = [{pipeline_mode = #tpu.pipeline_mode<synchronous>, transform_indices = @transform_0, window_bounds = array<i64: 16, 256>}, {transform_indices = @transform_1, window_bounds = array<i64: 256, 768>}, {pipeline_mode = #tpu.pipeline_mode<synchronous>, transform_indices = @transform_2, window_bounds = array<i64: 16, 1>}, {transform_indices = @transform_3, window_bounds = array<i64: 16, 768>}]} {
    %c0 = arith.constant 0 : index
    %c0_0 = arith.constant 0 : index
    %0 = vector.load %arg1[%c0, %c0_0] : memref<16x256xbf16, #tpu.memory_space<vmem>>, vector<16x256xbf16>
    %c0_1 = arith.constant 0 : index
    %c0_2 = arith.constant 0 : index
    %1 = vector.load %arg2[%c0_1, %c0_2] : memref<256x768xbf16, #tpu.memory_space<vmem>>, vector<256x768xbf16>
    %cst = arith.constant dense<0.000000e+00> : vector<16x768xf32>
    %2 = tpu.matmul %0, %1, %cst {dimension_numbers = #tpu.dot_dimension_numbers<[1], [0], [0], [1], [0, 0, 1, 1], [], []>} : vector<16x256xbf16>, vector<256x768xbf16>, vector<16x768xf32> -> vector<16x768xf32>
    %c0_3 = arith.constant 0 : index
    %c0_4 = arith.constant 0 : index
    %3 = vector.load %arg3[%c0_3, %c0_4] : memref<16x1xf32, #tpu.memory_space<vmem>>, vector<16x1xf32>
    %4 = vector.broadcast %3 : vector<16x1xf32> to vector<16x768xf32>
    %5 = arith.addf %2, %4 : vector<16x768xf32>
    %cst_5 = arith.constant 0.000000e+00 : f32
    %6 = vector.broadcast %cst_5 : f32 to vector<16x768xf32>
    %7 = arith.maximumf %5, %6 : vector<16x768xf32>
    %8 = arith.truncf %7 : vector<16x768xf32> to vector<16x768xbf16>
    %c0_6 = arith.constant 0 : index
    %c0_7 = arith.constant 0 : index
    %9 = vector.load %arg4[%c0_6, %c0_7] : memref<16x768xbf16, #tpu.memory_space<vmem>>, vector<16x768xbf16>
    tpu.vector_store %arg4[%c0_6, %c0_7], %8 {strides = array<i32>} : memref<16x768xbf16, #tpu.memory_space<vmem>>, vector<16x768xbf16>,
    return
  }
  func.func @transform_0(%arg0: i32) -> (i32, i32) {
    %c0_i32 = arith.constant 0 : i32
    %c0_i32_0 = arith.constant 0 : i32
    %c0_i32_1 = arith.constant 0 : i32
    return %c0_i32, %c0_i32_0 : i32, i32
  }
  func.func @transform_1(%arg0: i32) -> (i32, i32) {
    %c0_i32 = arith.constant 0 : i32
    %c0_i32_0 = arith.constant 0 : i32
    return %c0_i32, %arg0 : i32, i32
  }
  func.func @transform_2(%arg0: i32) -> (i32, i32) {
    %c0_i32 = arith.constant 0 : i32
    %c0_i32_0 = arith.constant 0 : i32
    %c0_i32_1 = arith.constant 0 : i32
    return %c0_i32, %c0_i32_0 : i32, i32
  }
  func.func @transform_3(%arg0: i32) -> (i32, i32) {
    %c0_i32 = arith.constant 0 : i32
    %c0_i32_0 = arith.constant 0 : i32
    return %c0_i32, %arg0 : i32, i32
  }
}

module attributes {stable_mosaic.version = 11 : i64} {
  func.func @_conv_matmul_kernel(%arg0: i32, %arg1: memref<32x256xbf16, #tpu.memory_space<vmem>>, %arg2: memref<256x128xbf16, #tpu.memory_space<vmem>>, %arg3: memref<32x1xf32, #tpu.memory_space<vmem>>, %arg4: memref<32x128xbf16, #tpu.memory_space<vmem>>) attributes {dimension_semantics = [#tpu.dimension_semantics<parallel>], iteration_bounds = array<i64: 1>, scalar_prefetch = 0 : i64, scratch_operands = 0 : i64, tpu.core_type = #tpu.core_type<tc>, window_params = [{pipeline_mode = #tpu.pipeline_mode<synchronous>, transform_indices = @transform_0, window_bounds = array<i64: 32, 256>}, {transform_indices = @transform_1, window_bounds = array<i64: 256, 128>}, {pipeline_mode = #tpu.pipeline_mode<synchronous>, transform_indices = @transform_2, window_bounds = array<i64: 32, 1>}, {transform_indices = @transform_3, window_bounds = array<i64: 32, 128>}]} {
    %c0 = arith.constant 0 : index
    %c0_0 = arith.constant 0 : index
    %0 = vector.load %arg1[%c0, %c0_0] : memref<32x256xbf16, #tpu.memory_space<vmem>>, vector<32x256xbf16>
    %c0_1 = arith.constant 0 : index
    %c0_2 = arith.constant 0 : index
    %1 = vector.load %arg2[%c0_1, %c0_2] : memref<256x128xbf16, #tpu.memory_space<vmem>>, vector<256x128xbf16>
    %cst = arith.constant dense<0.000000e+00> : vector<32x128xf32>
    %2 = tpu.matmul %0, %1, %cst {dimension_numbers = #tpu.dot_dimension_numbers<[1], [0], [0], [1], [0, 0, 1, 1], [], []>} : vector<32x256xbf16>, vector<256x128xbf16>, vector<32x128xf32> -> vector<32x128xf32>
    %c0_3 = arith.constant 0 : index
    %c0_4 = arith.constant 0 : index
    %3 = vector.load %arg3[%c0_3, %c0_4] : memref<32x1xf32, #tpu.memory_space<vmem>>, vector<32x1xf32>
    %4 = vector.broadcast %3 : vector<32x1xf32> to vector<32x128xf32>
    %5 = arith.addf %2, %4 : vector<32x128xf32>
    %cst_5 = arith.constant 0.000000e+00 : f32
    %6 = vector.broadcast %cst_5 : f32 to vector<32x128xf32>
    %7 = arith.maximumf %5, %6 : vector<32x128xf32>
    %8 = arith.truncf %7 : vector<32x128xf32> to vector<32x128xbf16>
    %c0_6 = arith.constant 0 : index
    %c0_7 = arith.constant 0 : index
    %9 = vector.load %arg4[%c0_6, %c0_7] : memref<32x128xbf16, #tpu.memory_space<vmem>>, vector<32x128xbf16>
    tpu.vector_store %arg4[%c0_6, %c0_7], %8 {strides = array<i32>} : memref<32x128xbf16, #tpu.memory_space<vmem>>, vector<32x128xbf16>,
    return
  }
  func.func @transform_0(%arg0: i32) -> (i32, i32) {
    %c0_i32 = arith.constant 0 : i32
    %c0_i32_0 = arith.constant 0 : i32
    %c0_i32_1 = arith.constant 0 : i32
    return %c0_i32, %c0_i32_0 : i32, i32
  }
  func.func @transform_1(%arg0: i32) -> (i32, i32) {
    %c0_i32 = arith.constant 0 : i32
    %c0_i32_0 = arith.constant 0 : i32
    return %c0_i32, %arg0 : i32, i32
  }
  func.func @transform_2(%arg0: i32) -> (i32, i32) {
    %c0_i32 = arith.constant 0 : i32
    %c0_i32_0 = arith.constant 0 : i32
    %c0_i32_1 = arith.constant 0 : i32
    return %c0_i32, %c0_i32_0 : i32, i32
  }
  func.func @transform_3(%arg0: i32) -> (i32, i32) {
    %c0_i32 = arith.constant 0 : i32
    %c0_i32_0 = arith.constant 0 : i32
    return %c0_i32, %arg0 : i32, i32
  }
}

module attributes {stable_mosaic.version = 11 : i64} {
  func.func @_mlp_head_kernel(%arg0: i32, %arg1: memref<2x2048xbf16, #tpu.memory_space<vmem>>, %arg2: memref<2048x128xbf16, #tpu.memory_space<vmem>>, %arg3: memref<1x128xf32, #tpu.memory_space<vmem>>, %arg4: memref<128x6xbf16, #tpu.memory_space<vmem>>, %arg5: memref<1x6xf32, #tpu.memory_space<vmem>>, %arg6: memref<2x6xf32, #tpu.memory_space<vmem>>) attributes {dimension_semantics = [#tpu.dimension_semantics<parallel>], iteration_bounds = array<i64: 1>, scalar_prefetch = 0 : i64, scratch_operands = 0 : i64, tpu.core_type = #tpu.core_type<tc>, window_params = [{transform_indices = @transform_0, window_bounds = array<i64: 2, 2048>}, {pipeline_mode = #tpu.pipeline_mode<synchronous>, transform_indices = @transform_1, window_bounds = array<i64: 2048, 128>}, {pipeline_mode = #tpu.pipeline_mode<synchronous>, transform_indices = @transform_2, window_bounds = array<i64: 1, 128>}, {pipeline_mode = #tpu.pipeline_mode<synchronous>, transform_indices = @transform_3, window_bounds = array<i64: 128, 6>}, {pipeline_mode = #tpu.pipeline_mode<synchronous>, transform_indices = @transform_4, window_bounds = array<i64: 1, 6>}, {transform_indices = @transform_5, window_bounds = array<i64: 2, 6>}]} {
    %c0 = arith.constant 0 : index
    %c0_0 = arith.constant 0 : index
    %0 = vector.load %arg1[%c0, %c0_0] : memref<2x2048xbf16, #tpu.memory_space<vmem>>, vector<2x2048xbf16>
    %c0_1 = arith.constant 0 : index
    %c0_2 = arith.constant 0 : index
    %1 = vector.load %arg2[%c0_1, %c0_2] : memref<2048x128xbf16, #tpu.memory_space<vmem>>, vector<2048x128xbf16>
    %cst = arith.constant dense<0.000000e+00> : vector<2x128xf32>
    %2 = tpu.matmul %0, %1, %cst {dimension_numbers = #tpu.dot_dimension_numbers<[1], [0], [0], [1], [0, 0, 1, 1], [], []>} : vector<2x2048xbf16>, vector<2048x128xbf16>, vector<2x128xf32> -> vector<2x128xf32>
    %c0_3 = arith.constant 0 : index
    %c0_4 = arith.constant 0 : index
    %3 = vector.load %arg3[%c0_3, %c0_4] : memref<1x128xf32, #tpu.memory_space<vmem>>, vector<1x128xf32>
    %4 = vector.broadcast %3 : vector<1x128xf32> to vector<2x128xf32>
    %5 = arith.addf %2, %4 : vector<2x128xf32>
    %cst_5 = arith.constant 0.000000e+00 : f32
    %6 = vector.broadcast %cst_5 : f32 to vector<2x128xf32>
    %7 = arith.maximumf %5, %6 : vector<2x128xf32>
    %8 = arith.truncf %7 : vector<2x128xf32> to vector<2x128xbf16>
    %c0_6 = arith.constant 0 : index
    %c0_7 = arith.constant 0 : index
    %9 = vector.load %arg4[%c0_6, %c0_7] : memref<128x6xbf16, #tpu.memory_space<vmem>>, vector<128x6xbf16>
    %cst_8 = arith.constant dense<0.000000e+00> : vector<2x6xf32>
    %10 = tpu.matmul %8, %9, %cst_8 {dimension_numbers = #tpu.dot_dimension_numbers<[1], [0], [0], [1], [0, 0, 1, 1], [], []>} : vector<2x128xbf16>, vector<128x6xbf16>, vector<2x6xf32> -> vector<2x6xf32>
    %c0_9 = arith.constant 0 : index
    %c0_10 = arith.constant 0 : index
    %11 = vector.load %arg5[%c0_9, %c0_10] : memref<1x6xf32, #tpu.memory_space<vmem>>, vector<1x6xf32>
    %12 = vector.broadcast %11 : vector<1x6xf32> to vector<2x6xf32>
    %13 = arith.addf %10, %12 : vector<2x6xf32>
    %cst_11 = arith.constant dense<0xFF800000> : vector<2xf32>
    %14 = vector.multi_reduction <maximumf>, %13, %cst_11 [1] : vector<2x6xf32> to vector<2xf32>
    %15 = vector.shape_cast %14 : vector<2xf32> to vector<2x1xf32>
    %16 = vector.broadcast %15 : vector<2x1xf32> to vector<2x6xf32>
    %17 = arith.subf %13, %16 : vector<2x6xf32>
    %18 = math.exp %17 : vector<2x6xf32>
    %cst_12 = arith.constant dense<0.000000e+00> : vector<2xf32>
    %19 = vector.multi_reduction <add>, %18, %cst_12 [1] : vector<2x6xf32> to vector<2xf32>
    %20 = vector.shape_cast %19 : vector<2xf32> to vector<2x1xf32>
    %21 = tpu.reciprocal %20 {approx = true} : vector<2x1xf32> -> vector<2x1xf32>
    %22 = vector.broadcast %21 : vector<2x1xf32> to vector<2x6xf32>
    %23 = arith.mulf %18, %22 : vector<2x6xf32>
    %c0_13 = arith.constant 0 : index
    %c0_14 = arith.constant 0 : index
    %24 = vector.load %arg6[%c0_13, %c0_14] : memref<2x6xf32, #tpu.memory_space<vmem>>, vector<2x6xf32>
    tpu.vector_store %arg6[%c0_13, %c0_14], %23 {strides = array<i32>} : memref<2x6xf32, #tpu.memory_space<vmem>>, vector<2x6xf32>,
    return
  }
  func.func @transform_0(%arg0: i32) -> (i32, i32) {
    %c0_i32 = arith.constant 0 : i32
    %c0_i32_0 = arith.constant 0 : i32
    return %arg0, %c0_i32 : i32, i32
  }
  func.func @transform_1(%arg0: i32) -> (i32, i32) {
    %c0_i32 = arith.constant 0 : i32
    %c0_i32_0 = arith.constant 0 : i32
    %c0_i32_1 = arith.constant 0 : i32
    return %c0_i32, %c0_i32_0 : i32, i32
  }
  func.func @transform_2(%arg0: i32) -> (i32, i32) {
    %c0_i32 = arith.constant 0 : i32
    %c0_i32_0 = arith.constant 0 : i32
    %c0_i32_1 = arith.constant 0 : i32
    return %c0_i32, %c0_i32_0 : i32, i32
  }
  func.func @transform_3(%arg0: i32) -> (i32, i32) {
    %c0_i32 = arith.constant 0 : i32
    %c0_i32_0 = arith.constant 0 : i32
    %c0_i32_1 = arith.constant 0 : i32
    return %c0_i32, %c0_i32_0 : i32, i32
  }
  func.func @transform_4(%arg0: i32) -> (i32, i32) {
    %c0_i32 = arith.constant 0 : i32
    %c0_i32_0 = arith.constant 0 : i32
    %c0_i32_1 = arith.constant 0 : i32
    return %c0_i32, %c0_i32_0 : i32, i32
  }
  func.func @transform_5(%arg0: i32) -> (i32, i32) {
    %c0_i32 = arith.constant 0 : i32
    %c0_i32_0 = arith.constant 0 : i32
    return %arg0, %c0_i32 : i32, i32
  }
}

</mosaic_0001>

<llo_original>
// kernel: reinforce_atari_forward.3
$region0: #{reinforce_atari_forward.3}
  #allocation0 [shape = 'u32[]', space=smem, size = 0x4, offset = 0x4, fixed_abs, tag = 'smem constant byte address 0x4 - core index']
  #allocation1 [shape = 'u32[72,128]{1,0:T(1,128)}', space=vmem, size = 0x9000, scoped, tag = 'internal scratch']
  %s0 = inlined_call_operand.vmem [shape: bf16[16,256], index: 0, kind: input, shape index: {}]
  %s1 = inlined_call_operand.vmem [shape: bf16[256,722], index: 1, kind: input, shape index: {}]
  %s2 = inlined_call_operand.vmem [shape: f32[16,1], index: 2, kind: input, shape index: {}]
  %s3 = inlined_call_operand.vmem [shape: bf16[16,722], index: 3, kind: output, shape index: {}]
  %s4 = sld [smem:[#allocation0]]
  $region22: #{reinforce_atari_forward.3} parent=0
    _
  %s6 = ssub.s32 1, %s4
  %s7 = scalar_select 0, %s6, %s4
  // Predicated region
  $region2: #{reinforce_atari_forward.3} parent=0 // pred_check
    _
  $region3: #{reinforce_atari_forward.3} parent=0 // pred_check_branch
    %9 = sbr.rel (0) target = $region5
  $region4: #{reinforce_atari_forward.3} parent=0 // pred_region
    _
  $region5: #{reinforce_atari_forward.3} parent=0 // pred_fallthru
    _
  // Predicated region
  $region6: #{reinforce_atari_forward.3} parent=0 // pred_check
    _
  $region7: #{reinforce_atari_forward.3} parent=0 // pred_check_branch
    %11 = sbr.rel (0) target = $region9
  $region8: #{reinforce_atari_forward.3} parent=0 // pred_region
    _
  $region9: #{reinforce_atari_forward.3} parent=0 // pred_fallthru
    _
  // Predicated region
  $region10: #{reinforce_atari_forward.3} parent=0 // pred_check
    _
  $region11: #{reinforce_atari_forward.3} parent=0 // pred_check_branch
    %13 = sbr.rel (0) target = $region13
  $region12: #{reinforce_atari_forward.3} parent=0 // pred_region
    _
  $region13: #{reinforce_atari_forward.3} parent=0 // pred_fallthru
    _
  %v14 = vld [vmem:[%s0] sm:$0xff]
  %v15 = vld [vmem:[%s0 + $0x8] sm:$0xff]
  %v16 = vld [vmem:[%s1] sm:$0xff]
  %v17 = vld [vmem:[%s1 + $0x8] sm:$0xff]
  %v18 = vld [vmem:[%s1 + $0x10] sm:$0xff]
  %v19 = vld [vmem:[%s1 + $0x18] sm:$0xff]
  %v20 = vld [vmem:[%s1 + $0x20] sm:$0xff]
  %v21 = vld [vmem:[%s1 + $0x28] sm:$0xff]
  %v22 = vld [vmem:[%s1 + $0x30] sm:$0xff]
  %v23 = vld [vmem:[%s1 + $0x38] sm:$0xff]
  %v24 = vld [vmem:[%s1 + $0x40] sm:$0xff]
  %v25 = vld [vmem:[%s1 + $0x48] sm:$0xff]
  %v26 = vld [vmem:[%s1 + $0x50] sm:$0xff]
  %v27 = vld [vmem:[%s1 + $0x58] sm:$0xff]
  %v28 = vld [vmem:[%s1 + $0x60] sm:$0xff]
  %v29 = vld [vmem:[%s1 + $0x68] sm:$0xff]
  %v30 = vld [vmem:[%s1 + $0x70] sm:$0xff]
  %v31 = vld [vmem:[%s1 + $0x78] sm:$0xff]
  %v32 = vld [vmem:[%s1 + $0x80] sm:$0xff]
  %v33 = vld [vmem:[%s1 + $0x88] sm:$0xff]
  %v34 = vld [vmem:[%s1 + $0x90] sm:$0xff]
  %v35 = vld [vmem:[%s1 + $0x98] sm:$0xff]
  %v36 = vld [vmem:[%s1 + $0xa0] sm:$0xff]
  %v37 = vld [vmem:[%s1 + $0xa8] sm:$0xff]
  %v38 = vld [vmem:[%s1 + $0xb0] sm:$0xff]
  %v39 = vld [vmem:[%s1 + $0xb8] sm:$0xff]
  %v40 = vld [vmem:[%s1 + $0xc0] sm:$0xff]
  %v41 = vld [vmem:[%s1 + $0xc8] sm:$0xff]
  %v42 = vld [vmem:[%s1 + $0xd0] sm:$0xff]
  %v43 = vld [vmem:[%s1 + $0xd8] sm:$0xff]
  %v44 = vld [vmem:[%s1 + $0xe0] sm:$0xff]
  %v45 = vld [vmem:[%s1 + $0xe8] sm:$0xff]
  %v46 = vld [vmem:[%s1 + $0xf0] sm:$0xff]
  %v47 = vld [vmem:[%s1 + $0xf8] sm:$0xff]
  %v48 = vld [vmem:[%s1 + $0x100] sm:$0xff]
  %v49 = vld [vmem:[%s1 + $0x108] sm:$0xff]
  %v50 = vld [vmem:[%s1 + $0x110] sm:$0xff]
  %v51 = vld [vmem:[%s1 + $0x118] sm:$0xff]
  %v52 = vld [vmem:[%s1 + $0x120] sm:$0xff]
  %v53 = vld [vmem:[%s1 + $0x128] sm:$0xff]
  %v54 = vld [vmem:[%s1 + $0x130] sm:$0xff]
  %v55 = vld [vmem:[%s1 + $0x138] sm:$0xff]
  %v56 = vld [vmem:[%s1 + $0x140] sm:$0xff]
  %v57 = vld [vmem:[%s1 + $0x148] sm:$0xff]
  %v58 = vld [vmem:[%s1 + $0x150] sm:$0xff]
  %v59 = vld [vmem:[%s1 + $0x158] sm:$0xff]
  %v60 = vld [vmem:[%s1 + $0x160] sm:$0xff]
  %v61 = vld [vmem:[%s1 + $0x168] sm:$0xff]
  %v62 = vld [vmem:[%s1 + $0x170] sm:$0xff]
  %v63 = vld [vmem:[%s1 + $0x178] sm:$0xff]
  %v64 = vld [vmem:[%s1 + $0x180] sm:$0xff]
  %v65 = vld [vmem:[%s1 + $0x188] sm:$0xff]
  %v66 = vld [vmem:[%s1 + $0x190] sm:$0xff]
  %v67 = vld [vmem:[%s1 + $0x198] sm:$0xff]
  %v68 = vld [vmem:[%s1 + $0x1a0] sm:$0xff]
  %v69 = vld [vmem:[%s1 + $0x1a8] sm:$0xff]
  %v70 = vld [vmem:[%s1 + $0x1b0] sm:$0xff]
  %v71 = vld [vmem:[%s1 + $0x1b8] sm:$0xff]
  %v72 = vld [vmem:[%s1 + $0x1c0] sm:$0xff]
  %v73 = vld [vmem:[%s1 + $0x1c8] sm:$0xff]
  %v74 = vld [vmem:[%s1 + $0x1d0] sm:$0xff]
  %v75 = vld [vmem:[%s1 + $0x1d8] sm:$0xff]
  %v76 = vld [vmem:[%s1 + $0x1e0] sm:$0xff]
  %v77 = vld [vmem:[%s1 + $0x1e8] sm:$0xff]
  %v78 = vld [vmem:[%s1 + $0x1f0] sm:$0xff]
  %v79 = vld [vmem:[%s1 + $0x1f8] sm:$0xff]
  %v80 = vld [vmem:[%s1 + $0x200] sm:$0xff]
  %v81 = vld [vmem:[%s1 + $0x208] sm:$0xff]
  %v82 = vld [vmem:[%s1 + $0x210] sm:$0xff]
  %v83 = vld [vmem:[%s1 + $0x218] sm:$0xff]
  %v84 = vld [vmem:[%s1 + $0x220] sm:$0xff]
  %v85 = vld [vmem:[%s1 + $0x228] sm:$0xff]
  %v86 = vld [vmem:[%s1 + $0x230] sm:$0xff]
  %v87 = vld [vmem:[%s1 + $0x238] sm:$0xff]
  %v88 = vld [vmem:[%s1 + $0x240] sm:$0xff]
  %v89 = vld [vmem:[%s1 + $0x248] sm:$0xff]
  %v90 = vld [vmem:[%s1 + $0x250] sm:$0xff]
  %v91 = vld [vmem:[%s1 + $0x258] sm:$0xff]
  %v92 = vld [vmem:[%s1 + $0x260] sm:$0xff]
  %v93 = vld [vmem:[%s1 + $0x268] sm:$0xff]
  %v94 = vld [vmem:[%s1 + $0x270] sm:$0xff]
  %v95 = vld [vmem:[%s1 + $0x278] sm:$0xff]
  %v96 = vld [vmem:[%s1 + $0x280] sm:$0xff]
  %v97 = vld [vmem:[%s1 + $0x288] sm:$0xff]
  %v98 = vld [vmem:[%s1 + $0x290] sm:$0xff]
  %v99 = vld [vmem:[%s1 + $0x298] sm:$0xff]
  %v100 = vld [vmem:[%s1 + $0x2a0] sm:$0xff]
  %v101 = vld [vmem:[%s1 + $0x2a8] sm:$0xff]
  %v102 = vld [vmem:[%s1 + $0x2b0] sm:$0xff]
  %v103 = vld [vmem:[%s1 + $0x2b8] sm:$0xff]
  %v104 = vld [vmem:[%s1 + $0x2c0] sm:$0xff]
  %v105 = vld [vmem:[%s1 + $0x2c8] sm:$0xff]
  %v106 = vld [vmem:[%s1 + $0x2d0] sm:$0xff]
  %v107 = vld [vmem:[%s1 + $0x2d8] sm:$0xff]
  %v108 = vld [vmem:[%s1 + $0x2e0] sm:$0xff]
  %v109 = vld [vmem:[%s1 + $0x2e8] sm:$0xff]
  %v110 = vld [vmem:[%s1 + $0x2f0] sm:$0xff]
  %v111 = vld [vmem:[%s1 + $0x2f8] sm:$0xff]
  %v112 = vld [vmem:[%s2] sm:$0xff]
  %v113 = vld [vmem:[%s2 + $0x8] sm:$0xff]
  %115 = vset.pattern.permute.xlu0 0
  %116 = vperm.xlu0 %115, %v112
  %v117 = vpop.permute.xlu0 %116
  %120 = vset.pattern.permute.xlu0 0
  %121 = vperm.xlu0 %120, %v113
  %v122 = vpop.permute.xlu0 %121
  %v126 = vunpack.c.l.b16 %v14
  %v127 = vunpack.c.h.b16 %v14
  %v128 = vunpack.c.l.b16 %v15
  %v129 = vunpack.c.h.b16 %v15
  %v130 = vpack.c.b16 %v128, %v126
  %v131 = vpack.c.b16 %v129, %v127
  %v230 = vunpack.c.l.b16 %v16
  %v231 = vunpack.c.h.b16 %v16
  %v232 = vunpack.c.l.b16 %v17
  %v233 = vunpack.c.h.b16 %v17
  %v234 = vunpack.c.l.b16 %v18
  %v235 = vunpack.c.h.b16 %v18
  %v236 = vunpack.c.l.b16 %v19
  %v237 = vunpack.c.h.b16 %v19
  %v238 = vunpack.c.l.b16 %v20
  %v239 = vunpack.c.h.b16 %v20
  %v240 = vunpack.c.l.b16 %v21
  %v241 = vunpack.c.h.b16 %v21
  %v242 = vunpack.c.l.b16 %v22
  %v243 = vunpack.c.h.b16 %v22
  %v244 = vunpack.c.l.b16 %v23
  %v245 = vunpack.c.h.b16 %v23
  %v246 = vunpack.c.l.b16 %v24
  %v247 = vunpack.c.h.b16 %v24
  %v248 = vunpack.c.l.b16 %v25
  %v249 = vunpack.c.h.b16 %v25
  %v250 = vunpack.c.l.b16 %v26
  %v251 = vunpack.c.h.b16 %v26
  %v252 = vunpack.c.l.b16 %v27
  %v253 = vunpack.c.h.b16 %v27
  %v254 = vunpack.c.l.b16 %v28
  %v255 = vunpack.c.h.b16 %v28
  %v256 = vunpack.c.l.b16 %v29
  %v257 = vunpack.c.h.b16 %v29
  %v258 = vunpack.c.l.b16 %v30
  %v259 = vunpack.c.h.b16 %v30
  %v260 = vunpack.c.l.b16 %v31
  %v261 = vunpack.c.h.b16 %v31
  %v262 = vunpack.c.l.b16 %v32
  %v263 = vunpack.c.h.b16 %v32
  %v264 = vunpack.c.l.b16 %v33
  %v265 = vunpack.c.h.b16 %v33
  %v266 = vunpack.c.l.b16 %v34
  %v267 = vunpack.c.h.b16 %v34
  %v268 = vunpack.c.l.b16 %v35
  %v269 = vunpack.c.h.b16 %v35
  %v270 = vunpack.c.l.b16 %v36
  %v271 = vunpack.c.h.b16 %v36
  %v272 = vunpack.c.l.b16 %v37
  %v273 = vunpack.c.h.b16 %v37
  %v274 = vunpack.c.l.b16 %v38
  %v275 = vunpack.c.h.b16 %v38
  %v276 = vunpack.c.l.b16 %v39
  %v277 = vunpack.c.h.b16 %v39
  %v278 = vunpack.c.l.b16 %v40
  %v279 = vunpack.c.h.b16 %v40
  %v280 = vunpack.c.l.b16 %v41
  %v281 = vunpack.c.h.b16 %v41
  %v282 = vunpack.c.l.b16 %v42
  %v283 = vunpack.c.h.b16 %v42
  %v284 = vunpack.c.l.b16 %v43
  %v285 = vunpack.c.h.b16 %v43
  %v286 = vunpack.c.l.b16 %v44
  %v287 = vunpack.c.h.b16 %v44
  %v288 = vunpack.c.l.b16 %v45
  %v289 = vunpack.c.h.b16 %v45
  %v290 = vunpack.c.l.b16 %v46
  %v291 = vunpack.c.h.b16 %v46
  %v292 = vunpack.c.l.b16 %v47
  %v293 = vunpack.c.h.b16 %v47
  %v294 = vunpack.c.l.b16 %v48
  %v295 = vunpack.c.h.b16 %v48
  %v296 = vunpack.c.l.b16 %v49
  %v297 = vunpack.c.h.b16 %v49
  %v298 = vunpack.c.l.b16 %v50
  %v299 = vunpack.c.h.b16 %v50
  %v300 = vunpack.c.l.b16 %v51
  %v301 = vunpack.c.h.b16 %v51
  %v302 = vunpack.c.l.b16 %v52
  %v303 = vunpack.c.h.b16 %v52
  %v304 = vunpack.c.l.b16 %v53
  %v305 = vunpack.c.h.b16 %v53
  %v306 = vunpack.c.l.b16 %v54
  %v307 = vunpack.c.h.b16 %v54
  %v308 = vunpack.c.l.b16 %v55
  %v309 = vunpack.c.h.b16 %v55
  %v310 = vunpack.c.l.b16 %v56
  %v311 = vunpack.c.h.b16 %v56
  %v312 = vunpack.c.l.b16 %v57
  %v313 = vunpack.c.h.b16 %v57
  %v314 = vunpack.c.l.b16 %v58
  %v315 = vunpack.c.h.b16 %v58
  %v316 = vunpack.c.l.b16 %v59
  %v317 = vunpack.c.h.b16 %v59
  %v318 = vunpack.c.l.b16 %v60
  %v319 = vunpack.c.h.b16 %v60
  %v320 = vunpack.c.l.b16 %v61
  %v321 = vunpack.c.h.b16 %v61
  %v322 = vunpack.c.l.b16 %v62
  %v323 = vunpack.c.h.b16 %v62
  %v324 = vunpack.c.l.b16 %v63
  %v325 = vunpack.c.h.b16 %v63
  %v326 = vunpack.c.l.b16 %v64
  %v327 = vunpack.c.h.b16 %v64
  %v328 = vunpack.c.l.b16 %v65
  %v329 = vunpack.c.h.b16 %v65
  %v330 = vunpack.c.l.b16 %v66
  %v331 = vunpack.c.h.b16 %v66
  %v332 = vunpack.c.l.b16 %v67
  %v333 = vunpack.c.h.b16 %v67
  %v334 = vunpack.c.l.b16 %v68
  %v335 = vunpack.c.h.b16 %v68
  %v336 = vunpack.c.l.b16 %v69
  %v337 = vunpack.c.h.b16 %v69
  %v338 = vunpack.c.l.b16 %v70
  %v339 = vunpack.c.h.b16 %v70
  %v340 = vunpack.c.l.b16 %v71
  %v341 = vunpack.c.h.b16 %v71
  %v342 = vunpack.c.l.b16 %v72
  %v343 = vunpack.c.h.b16 %v72
  %v344 = vunpack.c.l.b16 %v73
  %v345 = vunpack.c.h.b16 %v73
  %v346 = vunpack.c.l.b16 %v74
  %v347 = vunpack.c.h.b16 %v74
  %v348 = vunpack.c.l.b16 %v75
  %v349 = vunpack.c.h.b16 %v75
  %v350 = vunpack.c.l.b16 %v76
  %v351 = vunpack.c.h.b16 %v76
  %v352 = vunpack.c.l.b16 %v77
  %v353 = vunpack.c.h.b16 %v77
  %v354 = vunpack.c.l.b16 %v78
  %v355 = vunpack.c.h.b16 %v78
  %v356 = vunpack.c.l.b16 %v79
  %v357 = vunpack.c.h.b16 %v79
  %v358 = vunpack.c.l.b16 %v80
  %v359 = vunpack.c.h.b16 %v80
  %v360 = vunpack.c.l.b16 %v81
  %v361 = vunpack.c.h.b16 %v81
  %v362 = vunpack.c.l.b16 %v82
  %v363 = vunpack.c.h.b16 %v82
  %v364 = vunpack.c.l.b16 %v83
  %v365 = vunpack.c.h.b16 %v83
  %v366 = vunpack.c.l.b16 %v84
  %v367 = vunpack.c.h.b16 %v84
  %v368 = vunpack.c.l.b16 %v85
  %v369 = vunpack.c.h.b16 %v85
  %v370 = vunpack.c.l.b16 %v86
  %v371 = vunpack.c.h.b16 %v86
  %v372 = vunpack.c.l.b16 %v87
  %v373 = vunpack.c.h.b16 %v87
  %v374 = vunpack.c.l.b16 %v88
  %v375 = vunpack.c.h.b16 %v88
  %v376 = vunpack.c.l.b16 %v89
  %v377 = vunpack.c.h.b16 %v89
  %v378 = vunpack.c.l.b16 %v90
  %v379 = vunpack.c.h.b16 %v90
  %v380 = vunpack.c.l.b16 %v91
  %v381 = vunpack.c.h.b16 %v91
  %v382 = vunpack.c.l.b16 %v92
  %v383 = vunpack.c.h.b16 %v92
  %v384 = vunpack.c.l.b16 %v93
  %v385 = vunpack.c.h.b16 %v93
  %v386 = vunpack.c.l.b16 %v94
  %v387 = vunpack.c.h.b16 %v94
  %v388 = vunpack.c.l.b16 %v95
  %v389 = vunpack.c.h.b16 %v95
  %v390 = vunpack.c.l.b16 %v96
  %v391 = vunpack.c.h.b16 %v96
  %v392 = vunpack.c.l.b16 %v97
  %v393 = vunpack.c.h.b16 %v97
  %v394 = vunpack.c.l.b16 %v98
  %v395 = vunpack.c.h.b16 %v98
  %v396 = vunpack.c.l.b16 %v99
  %v397 = vunpack.c.h.b16 %v99
  %v398 = vunpack.c.l.b16 %v100
  %v399 = vunpack.c.h.b16 %v100
  %v400 = vunpack.c.l.b16 %v101
  %v401 = vunpack.c.h.b16 %v101
  %v402 = vunpack.c.l.b16 %v102
  %v403 = vunpack.c.h.b16 %v102
  %v404 = vunpack.c.l.b16 %v103
  %v405 = vunpack.c.h.b16 %v103
  %v406 = vunpack.c.l.b16 %v104
  %v407 = vunpack.c.h.b16 %v104
  %v408 = vunpack.c.l.b16 %v105
  %v409 = vunpack.c.h.b16 %v105
  %v410 = vunpack.c.l.b16 %v106
  %v411 = vunpack.c.h.b16 %v106
  %v412 = vunpack.c.l.b16 %v107
  %v413 = vunpack.c.h.b16 %v107
  %v414 = vunpack.c.l.b16 %v108
  %v415 = vunpack.c.h.b16 %v108
  %v416 = vunpack.c.l.b16 %v109
  %v417 = vunpack.c.h.b16 %v109
  %v418 = vunpack.c.l.b16 %v110
  %v419 = vunpack.c.h.b16 %v110
  %v420 = vunpack.c.l.b16 %v111
  %v421 = vunpack.c.h.b16 %v111
  %v422 = vpack.c.b16 %v236, %v230
  %v423 = vpack.c.b16 %v237, %v231
  %v424 = vpack.c.b16 %v238, %v232
  %v425 = vpack.c.b16 %v239, %v233
  %v426 = vpack.c.b16 %v240, %v234
  %v427 = vpack.c.b16 %v241, %v235
  %v428 = vpack.c.b16 %v248, %v242
  %v429 = vpack.c.b16 %v249, %v243
  %v430 = vpack.c.b16 %v250, %v244
  %v431 = vpack.c.b16 %v251, %v245
  %v432 = vpack.c.b16 %v252, %v246
  %v433 = vpack.c.b16 %v253, %v247
  %v434 = vpack.c.b16 %v260, %v254
  %v435 = vpack.c.b16 %v261, %v255
  %v436 = vpack.c.b16 %v262, %v256
  %v437 = vpack.c.b16 %v263, %v257
  %v438 = vpack.c.b16 %v264, %v258
  %v439 = vpack.c.b16 %v265, %v259
  %v440 = vpack.c.b16 %v272, %v266
  %v441 = vpack.c.b16 %v273, %v267
  %v442 = vpack.c.b16 %v274, %v268
  %v443 = vpack.c.b16 %v275, %v269
  %v444 = vpack.c.b16 %v276, %v270
  %v445 = vpack.c.b16 %v277, %v271
  %v446 = vpack.c.b16 %v284, %v278
  %v447 = vpack.c.b16 %v285, %v279
  %v448 = vpack.c.b16 %v286, %v280
  %v449 = vpack.c.b16 %v287, %v281
  %v450 = vpack.c.b16 %v288, %v282
  %v451 = vpack.c.b16 %v289, %v283
  %v452 = vpack.c.b16 %v296, %v290
  %v453 = vpack.c.b16 %v297, %v291
  %v454 = vpack.c.b16 %v298, %v292
  %v455 = vpack.c.b16 %v299, %v293
  %v456 = vpack.c.b16 %v300, %v294
  %v457 = vpack.c.b16 %v301, %v295
  %v458 = vpack.c.b16 %v308, %v302
  %v459 = vpack.c.b16 %v309, %v303
  %v460 = vpack.c.b16 %v310, %v304
  %v461 = vpack.c.b16 %v311, %v305
  %v462 = vpack.c.b16 %v312, %v306
  %v463 = vpack.c.b16 %v313, %v307
  %v464 = vpack.c.b16 %v320, %v314
  %v465 = vpack.c.b16 %v321, %v315
  %v466 = vpack.c.b16 %v322, %v316
  %v467 = vpack.c.b16 %v323, %v317
  %v468 = vpack.c.b16 %v324, %v318
  %v469 = vpack.c.b16 %v325, %v319
  %v470 = vpack.c.b16 %v332, %v326
  %v471 = vpack.c.b16 %v333, %v327
  %v472 = vpack.c.b16 %v334, %v328
  %v473 = vpack.c.b16 %v335, %v329
  %v474 = vpack.c.b16 %v336, %v330
  %v475 = vpack.c.b16 %v337, %v331
  %v476 = vpack.c.b16 %v344, %v338
  %v477 = vpack.c.b16 %v345, %v339
  %v478 = vpack.c.b16 %v346, %v340
  %v479 = vpack.c.b16 %v347, %v341
  %v480 = vpack.c.b16 %v348, %v342
  %v481 = vpack.c.b16 %v349, %v343
  %v482 = vpack.c.b16 %v356, %v350
  %v483 = vpack.c.b16 %v357, %v351
  %v484 = vpack.c.b16 %v358, %v352
  %v485 = vpack.c.b16 %v359, %v353
  %v486 = vpack.c.b16 %v360, %v354
  %v487 = vpack.c.b16 %v361, %v355
  %v488 = vpack.c.b16 %v368, %v362
  %v489 = vpack.c.b16 %v369, %v363
  %v490 = vpack.c.b16 %v370, %v364
  %v491 = vpack.c.b16 %v371, %v365
  %v492 = vpack.c.b16 %v372, %v366
  %v493 = vpack.c.b16 %v373, %v367
  %v494 = vpack.c.b16 %v380, %v374
  %v495 = vpack.c.b16 %v381, %v375
  %v496 = vpack.c.b16 %v382, %v376
  %v497 = vpack.c.b16 %v383, %v377
  %v498 = vpack.c.b16 %v384, %v378
  %v499 = vpack.c.b16 %v385, %v379
  %v500 = vpack.c.b16 %v392, %v386
  %v501 = vpack.c.b16 %v393, %v387
  %v502 = vpack.c.b16 %v394, %v388
  %v503 = vpack.c.b16 %v395, %v389
  %v504 = vpack.c.b16 %v396, %v390
  %v505 = vpack.c.b16 %v397, %v391
  %v506 = vpack.c.b16 %v404, %v398
  %v507 = vpack.c.b16 %v405, %v399
  %v508 = vpack.c.b16 %v406, %v400
  %v509 = vpack.c.b16 %v407, %v401
  %v510 = vpack.c.b16 %v408, %v402
  %v511 = vpack.c.b16 %v409, %v403
  %v512 = vpack.c.b16 %v416, %v410
  %v513 = vpack.c.b16 %v417, %v411
  %v514 = vpack.c.b16 %v418, %v412
  %v515 = vpack.c.b16 %v419, %v413
  %v516 = vpack.c.b16 %v420, %v414
  %v517 = vpack.c.b16 %v421, %v415
  %614 = vmatpush.bf16.msra.mxu0 %v464
  %615 = vmatpush.bf16.msra.mxu0 %v458
  %616 = vmatpush.bf16.msra.mxu0 %v452
  %617 = vmatpush.bf16.msra.mxu0 %v446
  %618 = vmatpush.bf16.msra.mxu0 %v440
  %619 = vmatpush.bf16.msra.mxu0 %v434
  %620 = vmatpush.bf16.msra.mxu0 %v428
  %621 = vmatpush.bf16.msra.mxu0 %v422
  %622 = vmatmul.bf16.gmra.mxu0 %v130
  %v623 = vpop.f32.mrf.mxu0
  %v624 = vadd.f32 %v117, %v623
  %v625 = vpop.f32.mrf.mxu0
  %v626 = vadd.f32 %v122, %v625
  %627 = vdwg.mxu0
  %628 = vmatpush.bf16.msra.mxu0 %v512
  %629 = vmatpush.bf16.msra.mxu0 %v506
  %630 = vmatpush.bf16.msra.mxu0 %v500
  %631 = vmatpush.bf16.msra.mxu0 %v494
  %632 = vmatpush.bf16.msra.mxu0 %v488
  %633 = vmatpush.bf16.msra.mxu0 %v482
  %634 = vmatpush.bf16.msra.mxu0 %v476
  %635 = vmatpush.bf16.msra.mxu0 %v470
  %636 = vmatmul.bf16.gmra.mxu0 %v131
  %v637 = vpop.f32.mrf.mxu0
  %v638 = vadd.f32 %v624, %v637
  %v639 = vpop.f32.mrf.mxu0
  %v640 = vadd.f32 %v626, %v639
  %641 = vdwg.mxu0
  %642 = vmatpush.bf16.msra.mxu0 %v465
  %643 = vmatpush.bf16.msra.mxu0 %v459
  %644 = vmatpush.bf16.msra.mxu0 %v453
  %645 = vmatpush.bf16.msra.mxu0 %v447
  %646 = vmatpush.bf16.msra.mxu0 %v441
  %647 = vmatpush.bf16.msra.mxu0 %v435
  %648 = vmatpush.bf16.msra.mxu0 %v429
  %649 = vmatpush.bf16.msra.mxu0 %v423
  %650 = vmatmul.bf16.gmra.mxu0 %v130
  %v651 = vpop.f32.mrf.mxu0
  %v652 = vadd.f32 %v117, %v651
  %v653 = vpop.f32.mrf.mxu0
  %v654 = vadd.f32 %v122, %v653
  %655 = vdwg.mxu0
  %656 = vmatpush.bf16.msra.mxu0 %v513
  %657 = vmatpush.bf16.msra.mxu0 %v507
  %658 = vmatpush.bf16.msra.mxu0 %v501
  %659 = vmatpush.bf16.msra.mxu0 %v495
  %660 = vmatpush.bf16.msra.mxu0 %v489
  %661 = vmatpush.bf16.msra.mxu0 %v483
  %662 = vmatpush.bf16.msra.mxu0 %v477
  %663 = vmatpush.bf16.msra.mxu0 %v471
  %664 = vmatmul.bf16.gmra.mxu0 %v131
  %v665 = vpop.f32.mrf.mxu0
  %v666 = vadd.f32 %v652, %v665
  %v667 = vpop.f32.mrf.mxu0
  %v668 = vadd.f32 %v654, %v667
  %669 = vdwg.mxu0
  %670 = vmatpush.bf16.msra.mxu0 %v466
  %671 = vmatpush.bf16.msra.mxu0 %v460
  %672 = vmatpush.bf16.msra.mxu0 %v454
  %673 = vmatpush.bf16.msra.mxu0 %v448
  %674 = vmatpush.bf16.msra.mxu0 %v442
  %675 = vmatpush.bf16.msra.mxu0 %v436
  %676 = vmatpush.bf16.msra.mxu0 %v430
  %677 = vmatpush.bf16.msra.mxu0 %v424
  %678 = vmatmul.bf16.gmra.mxu0 %v130
  %v679 = vpop.f32.mrf.mxu0
  %v680 = vadd.f32 %v117, %v679
  %v681 = vpop.f32.mrf.mxu0
  %v682 = vadd.f32 %v122, %v681
  %683 = vdwg.mxu0
  %684 = vmatpush.bf16.msra.mxu0 %v514
  %685 = vmatpush.bf16.msra.mxu0 %v508
  %686 = vmatpush.bf16.msra.mxu0 %v502
  %687 = vmatpush.bf16.msra.mxu0 %v496
  %688 = vmatpush.bf16.msra.mxu0 %v490
  %689 = vmatpush.bf16.msra.mxu0 %v484
  %690 = vmatpush.bf16.msra.mxu0 %v478
  %691 = vmatpush.bf16.msra.mxu0 %v472
  %692 = vmatmul.bf16.gmra.mxu0 %v131
  %v693 = vpop.f32.mrf.mxu0
  %v694 = vadd.f32 %v680, %v693
  %v695 = vpop.f32.mrf.mxu0
  %v696 = vadd.f32 %v682, %v695
  %697 = vdwg.mxu0
  %698 = vmatpush.bf16.msra.mxu0 %v467
  %699 = vmatpush.bf16.msra.mxu0 %v461
  %700 = vmatpush.bf16.msra.mxu0 %v455
  %701 = vmatpush.bf16.msra.mxu0 %v449
  %702 = vmatpush.bf16.msra.mxu0 %v443
  %703 = vmatpush.bf16.msra.mxu0 %v437
  %704 = vmatpush.bf16.msra.mxu0 %v431
  %705 = vmatpush.bf16.msra.mxu0 %v425
  %706 = vmatmul.bf16.gmra.mxu0 %v130
  %v707 = vpop.f32.mrf.mxu0
  %v708 = vadd.f32 %v117, %v707
  %v709 = vpop.f32.mrf.mxu0
  %v710 = vadd.f32 %v122, %v709
  %711 = vdwg.mxu0
  %712 = vmatpush.bf16.msra.mxu0 %v515
  %713 = vmatpush.bf16.msra.mxu0 %v509
  %714 = vmatpush.bf16.msra.mxu0 %v503
  %715 = vmatpush.bf16.msra.mxu0 %v497
  %716 = vmatpush.bf16.msra.mxu0 %v491
  %717 = vmatpush.bf16.msra.mxu0 %v485
  %718 = vmatpush.bf16.msra.mxu0 %v479
  %719 = vmatpush.bf16.msra.mxu0 %v473
  %720 = vmatmul.bf16.gmra.mxu0 %v131
  %v721 = vpop.f32.mrf.mxu0
  %v722 = vadd.f32 %v708, %v721
  %v723 = vpop.f32.mrf.mxu0
  %v724 = vadd.f32 %v710, %v723
  %725 = vdwg.mxu0
  %726 = vmatpush.bf16.msra.mxu0 %v468
  %727 = vmatpush.bf16.msra.mxu0 %v462
  %728 = vmatpush.bf16.msra.mxu0 %v456
  %729 = vmatpush.bf16.msra.mxu0 %v450
  %730 = vmatpush.bf16.msra.mxu0 %v444
  %731 = vmatpush.bf16.msra.mxu0 %v438
  %732 = vmatpush.bf16.msra.mxu0 %v432
  %733 = vmatpush.bf16.msra.mxu0 %v426
  %734 = vmatmul.bf16.gmra.mxu0 %v130
  %v735 = vpop.f32.mrf.mxu0
  %v736 = vadd.f32 %v117, %v735
  %v737 = vpop.f32.mrf.mxu0
  %v738 = vadd.f32 %v122, %v737
  %739 = vdwg.mxu0
  %740 = vmatpush.bf16.msra.mxu0 %v516
  %741 = vmatpush.bf16.msra.mxu0 %v510
  %742 = vmatpush.bf16.msra.mxu0 %v504
  %743 = vmatpush.bf16.msra.mxu0 %v498
  %744 = vmatpush.bf16.msra.mxu0 %v492
  %745 = vmatpush.bf16.msra.mxu0 %v486
  %746 = vmatpush.bf16.msra.mxu0 %v480
  %747 = vmatpush.bf16.msra.mxu0 %v474
  %748 = vmatmul.bf16.gmra.mxu0 %v131
  %v749 = vpop.f32.mrf.mxu0
  %v750 = vadd.f32 %v736, %v749
  %v751 = vpop.f32.mrf.mxu0
  %v752 = vadd.f32 %v738, %v751
  %753 = vdwg.mxu0
  %754 = vmatpush.bf16.msra.mxu0 %v469
  %755 = vmatpush.bf16.msra.mxu0 %v463
  %756 = vmatpush.bf16.msra.mxu0 %v457
  %757 = vmatpush.bf16.msra.mxu0 %v451
  %758 = vmatpush.bf16.msra.mxu0 %v445
  %759 = vmatpush.bf16.msra.mxu0 %v439
  %760 = vmatpush.bf16.msra.mxu0 %v433
  %761 = vmatpush.bf16.msra.mxu0 %v427
  %762 = vmatmul.bf16.gmra.mxu0 %v130
  %v763 = vpop.f32.mrf.mxu0
  %v764 = vadd.f32 %v117, %v763
  %v765 = vpop.f32.mrf.mxu0
  %v766 = vadd.f32 %v122, %v765
  %767 = vdwg.mxu0
  %768 = vmatpush.bf16.msra.mxu0 %v517
  %769 = vmatpush.bf16.msra.mxu0 %v511
  %770 = vmatpush.bf16.msra.mxu0 %v505
  %771 = vmatpush.bf16.msra.mxu0 %v499
  %772 = vmatpush.bf16.msra.mxu0 %v493
  %773 = vmatpush.bf16.msra.mxu0 %v487
  %774 = vmatpush.bf16.msra.mxu0 %v481
  %775 = vmatpush.bf16.msra.mxu0 %v475
  %776 = vmatmul.bf16.gmra.mxu0 %v131
  %v777 = vpop.f32.mrf.mxu0
  %v778 = vadd.f32 %v764, %v777
  %v779 = vpop.f32.mrf.mxu0
  %v780 = vadd.f32 %v766, %v779
  %781 = vdwg.mxu0
  %v782 = vmax.f32 %v638, 0.0
  %v783 = vmax.f32 %v666, 0.0
  %v784 = vmax.f32 %v694, 0.0
  %v785 = vmax.f32 %v722, 0.0
  %v786 = vmax.f32 %v750, 0.0
  %v787 = vmax.f32 %v778, 0.0
  %v788 = vmax.f32 %v640, 0.0
  %v789 = vmax.f32 %v668, 0.0
  %v790 = vmax.f32 %v696, 0.0
  %v791 = vmax.f32 %v724, 0.0
  %v792 = vmax.f32 %v752, 0.0
  %v793 = vmax.f32 %v780, 0.0
  %v794 = vpack.c.bf16 %v783, %v782
  %v795 = vpack.c.bf16 %v785, %v784
  %v796 = vpack.c.bf16 %v787, %v786
  %v797 = vpack.c.bf16 %v789, %v788
  %v798 = vpack.c.bf16 %v791, %v790
  %v799 = vpack.c.bf16 %v793, %v792
  %800 = vst [vmem:[%s3] sm:$0xff] %v794
  %801 = vst [vmem:[%s3 + $0x8] sm:$0xff] %v795
  %802 = vst [vmem:[%s3 + $0x10] sm:$0xff] %v796
  %803 = vst [vmem:[%s3 + $0x18] sm:$0xff] %v797
  %804 = vst [vmem:[%s3 + $0x20] sm:$0xff] %v798
  %805 = vst [vmem:[%s3 + $0x28] sm:$0xff] %v799
  // Predicated region
  $region14: #{reinforce_atari_forward.3} parent=0 // pred_check
    _
  $region15: #{reinforce_atari_forward.3} parent=0 // pred_check_branch
    %807 = sbr.rel (0) target = $region17
  $region16: #{reinforce_atari_forward.3} parent=0 // pred_region
    _
  $region17: #{reinforce_atari_forward.3} parent=0 // pred_fallthru
    _
  // Predicated region
  $region18: #{reinforce_atari_forward.3} parent=0 // pred_check
    _
  $region19: #{reinforce_atari_forward.3} parent=0 // pred_check_branch
    %809 = sbr.rel (0) target = $region21
  $region20: #{reinforce_atari_forward.3} parent=0 // pred_region
    _
  $region21: #{reinforce_atari_forward.3} parent=0 // pred_fallthru
    _

// kernel: reinforce_atari_forward.4
$region0: #{reinforce_atari_forward.4}
  #allocation0 [shape = 'u32[]', space=smem, size = 0x4, offset = 0x4, fixed_abs, tag = 'smem constant byte address 0x4 - core index']
  #allocation1 [shape = 'u32[72,128]{1,0:T(1,128)}', space=vmem, size = 0x9000, scoped, tag = 'internal scratch']
  %s0 = inlined_call_operand.vmem [shape: bf16[32,256], index: 0, kind: input, shape index: {}]
  %s1 = inlined_call_operand.vmem [shape: bf16[256,128], index: 1, kind: input, shape index: {}]
  %s2 = inlined_call_operand.vmem [shape: f32[32,1], index: 2, kind: input, shape index: {}]
  %s3 = inlined_call_operand.vmem [shape: bf16[32,128], index: 3, kind: output, shape index: {}]
  %s4 = sld [smem:[#allocation0]]
  $region22: #{reinforce_atari_forward.4} parent=0
    _
  %s6 = ssub.s32 1, %s4
  %s7 = scalar_select 0, %s6, %s4
  // Predicated region
  $region2: #{reinforce_atari_forward.4} parent=0 // pred_check
    _
  $region3: #{reinforce_atari_forward.4} parent=0 // pred_check_branch
    %9 = sbr.rel (0) target = $region5
  $region4: #{reinforce_atari_forward.4} parent=0 // pred_region
    _
  $region5: #{reinforce_atari_forward.4} parent=0 // pred_fallthru
    _
  // Predicated region
  $region6: #{reinforce_atari_forward.4} parent=0 // pred_check
    _
  $region7: #{reinforce_atari_forward.4} parent=0 // pred_check_branch
    %11 = sbr.rel (0) target = $region9
  $region8: #{reinforce_atari_forward.4} parent=0 // pred_region
    _
  $region9: #{reinforce_atari_forward.4} parent=0 // pred_fallthru
    _
  // Predicated region
  $region10: #{reinforce_atari_forward.4} parent=0 // pred_check
    _
  $region11: #{reinforce_atari_forward.4} parent=0 // pred_check_branch
    %13 = sbr.rel (0) target = $region13
  $region12: #{reinforce_atari_forward.4} parent=0 // pred_region
    _
  $region13: #{reinforce_atari_forward.4} parent=0 // pred_fallthru
    _
  %v14 = vld [vmem:[%s0] sm:$0xff]
  %v15 = vld [vmem:[%s0 + $0x8] sm:$0xff]
  %v16 = vld [vmem:[%s0 + $0x10] sm:$0xff]
  %v17 = vld [vmem:[%s0 + $0x18] sm:$0xff]
  %v18 = vld [vmem:[%s1] sm:$0xf]
  %v19 = vld [vmem:[%s1 + $0x4] sm:$0xf]
  %v20 = vld [vmem:[%s1 + $0x8] sm:$0xf]
  %v21 = vld [vmem:[%s1 + $0xc] sm:$0xf]
  %v22 = vld [vmem:[%s1 + $0x10] sm:$0xf]
  %v23 = vld [vmem:[%s1 + $0x14] sm:$0xf]
  %v24 = vld [vmem:[%s1 + $0x18] sm:$0xf]
  %v25 = vld [vmem:[%s1 + $0x1c] sm:$0xf]
  %v26 = vld [vmem:[%s1 + $0x20] sm:$0xf]
  %v27 = vld [vmem:[%s1 + $0x24] sm:$0xf]
  %v28 = vld [vmem:[%s1 + $0x28] sm:$0xf]
  %v29 = vld [vmem:[%s1 + $0x2c] sm:$0xf]
  %v30 = vld [vmem:[%s1 + $0x30] sm:$0xf]
  %v31 = vld [vmem:[%s1 + $0x34] sm:$0xf]
  %v32 = vld [vmem:[%s1 + $0x38] sm:$0xf]
  %v33 = vld [vmem:[%s1 + $0x3c] sm:$0xf]
  %v34 = vld [vmem:[%s1 + $0x40] sm:$0xf]
  %v35 = vld [vmem:[%s1 + $0x44] sm:$0xf]
  %v36 = vld [vmem:[%s1 + $0x48] sm:$0xf]
  %v37 = vld [vmem:[%s1 + $0x4c] sm:$0xf]
  %v38 = vld [vmem:[%s1 + $0x50] sm:$0xf]
  %v39 = vld [vmem:[%s1 + $0x54] sm:$0xf]
  %v40 = vld [vmem:[%s1 + $0x58] sm:$0xf]
  %v41 = vld [vmem:[%s1 + $0x5c] sm:$0xf]
  %v42 = vld [vmem:[%s1 + $0x60] sm:$0xf]
  %v43 = vld [vmem:[%s1 + $0x64] sm:$0xf]
  %v44 = vld [vmem:[%s1 + $0x68] sm:$0xf]
  %v45 = vld [vmem:[%s1 + $0x6c] sm:$0xf]
  %v46 = vld [vmem:[%s1 + $0x70] sm:$0xf]
  %v47 = vld [vmem:[%s1 + $0x74] sm:$0xf]
  %v48 = vld [vmem:[%s1 + $0x78] sm:$0xf]
  %v49 = vld [vmem:[%s1 + $0x7c] sm:$0xf]
  %v50 = vld [vmem:[%s2] sm:$0xff]
  %v51 = vld [vmem:[%s2 + $0x8] sm:$0xff]
  %v52 = vld [vmem:[%s2 + $0x10] sm:$0xff]
  %v53 = vld [vmem:[%s2 + $0x18] sm:$0xff]
  %55 = vset.pattern.permute.xlu0 0
  %56 = vperm.xlu0 %55, %v50
  %v57 = vpop.permute.xlu0 %56
  %60 = vset.pattern.permute.xlu0 0
  %61 = vperm.xlu0 %60, %v51
  %v62 = vpop.permute.xlu0 %61
  %65 = vset.pattern.permute.xlu0 0
  %66 = vperm.xlu0 %65, %v52
  %v67 = vpop.permute.xlu0 %66
  %70 = vset.pattern.permute.xlu0 0
  %71 = vperm.xlu0 %70, %v53
  %v72 = vpop.permute.xlu0 %71
  %v78 = vunpack.c.l.b16 %v14
  %v79 = vunpack.c.h.b16 %v14
  %v80 = vunpack.c.l.b16 %v15
  %v81 = vunpack.c.h.b16 %v15
  %v82 = vunpack.c.l.b16 %v16
  %v83 = vunpack.c.h.b16 %v16
  %v84 = vunpack.c.l.b16 %v17
  %v85 = vunpack.c.h.b16 %v17
  %v86 = vpack.c.b16 %v80, %v78
  %v87 = vpack.c.b16 %v81, %v79
  %v88 = vpack.c.b16 %v84, %v82
  %v89 = vpack.c.b16 %v85, %v83
  %v126 = vunpack.c.l.b16 %v18
  %v127 = vunpack.c.l.b16 %v19
  %v128 = vunpack.c.l.b16 %v20
  %v129 = vunpack.c.l.b16 %v21
  %v130 = vunpack.c.l.b16 %v22
  %v131 = vunpack.c.l.b16 %v23
  %v132 = vunpack.c.l.b16 %v24
  %v133 = vunpack.c.l.b16 %v25
  %v134 = vunpack.c.l.b16 %v26
  %v135 = vunpack.c.l.b16 %v27
  %v136 = vunpack.c.l.b16 %v28
  %v137 = vunpack.c.l.b16 %v29
  %v138 = vunpack.c.l.b16 %v30
  %v139 = vunpack.c.l.b16 %v31
  %v140 = vunpack.c.l.b16 %v32
  %v141 = vunpack.c.l.b16 %v33
  %v142 = vunpack.c.l.b16 %v34
  %v143 = vunpack.c.l.b16 %v35
  %v144 = vunpack.c.l.b16 %v36
  %v145 = vunpack.c.l.b16 %v37
  %v146 = vunpack.c.l.b16 %v38
  %v147 = vunpack.c.l.b16 %v39
  %v148 = vunpack.c.l.b16 %v40
  %v149 = vunpack.c.l.b16 %v41
  %v150 = vunpack.c.l.b16 %v42
  %v151 = vunpack.c.l.b16 %v43
  %v152 = vunpack.c.l.b16 %v44
  %v153 = vunpack.c.l.b16 %v45
  %v154 = vunpack.c.l.b16 %v46
  %v155 = vunpack.c.l.b16 %v47
  %v156 = vunpack.c.l.b16 %v48
  %v157 = vunpack.c.l.b16 %v49
  %v158 = vpack.c.b16 %v127, %v126
  %v159 = vpack.c.b16 %v129, %v128
  %v160 = vpack.c.b16 %v131, %v130
  %v161 = vpack.c.b16 %v133, %v132
  %v162 = vpack.c.b16 %v135, %v134
  %v163 = vpack.c.b16 %v137, %v136
  %v164 = vpack.c.b16 %v139, %v138
  %v165 = vpack.c.b16 %v141, %v140
  %v166 = vpack.c.b16 %v143, %v142
  %v167 = vpack.c.b16 %v145, %v144
  %v168 = vpack.c.b16 %v147, %v146
  %v169 = vpack.c.b16 %v149, %v148
  %v170 = vpack.c.b16 %v151, %v150
  %v171 = vpack.c.b16 %v153, %v152
  %v172 = vpack.c.b16 %v155, %v154
  %v173 = vpack.c.b16 %v157, %v156
  %190 = vmatpush.bf16.msra.mxu0 %v165
  %191 = vmatpush.bf16.msra.mxu0 %v164
  %192 = vmatpush.bf16.msra.mxu0 %v163
  %193 = vmatpush.bf16.msra.mxu0 %v162
  %194 = vmatpush.bf16.msra.mxu0 %v161
  %195 = vmatpush.bf16.msra.mxu0 %v160
  %196 = vmatpush.bf16.msra.mxu0 %v159
  %197 = vmatpush.bf16.msra.mxu0 %v158
  %198 = vmatmul.bf16.gmra.mxu0 %v86
  %v199 = vpop.f32.mrf.mxu0
  %v200 = vadd.f32 %v57, %v199
  %v201 = vpop.f32.mrf.mxu0
  %v202 = vadd.f32 %v62, %v201
  %203 = vmatmul.bf16.gmra.mxu0 %v88
  %v204 = vpop.f32.mrf.mxu0
  %v205 = vadd.f32 %v67, %v204
  %v206 = vpop.f32.mrf.mxu0
  %v207 = vadd.f32 %v72, %v206
  %208 = vdwg.mxu0
  %209 = vmatpush.bf16.msra.mxu0 %v173
  %210 = vmatpush.bf16.msra.mxu0 %v172
  %211 = vmatpush.bf16.msra.mxu0 %v171
  %212 = vmatpush.bf16.msra.mxu0 %v170
  %213 = vmatpush.bf16.msra.mxu0 %v169
  %214 = vmatpush.bf16.msra.mxu0 %v168
  %215 = vmatpush.bf16.msra.mxu0 %v167
  %216 = vmatpush.bf16.msra.mxu0 %v166
  %217 = vmatmul.bf16.gmra.mxu0 %v87
  %v218 = vpop.f32.mrf.mxu0
  %v219 = vadd.f32 %v200, %v218
  %v220 = vpop.f32.mrf.mxu0
  %v221 = vadd.f32 %v202, %v220
  %222 = vmatmul.bf16.gmra.mxu0 %v89
  %v223 = vpop.f32.mrf.mxu0
  %v224 = vadd.f32 %v205, %v223
  %v225 = vpop.f32.mrf.mxu0
  %v226 = vadd.f32 %v207, %v225
  %227 = vdwg.mxu0
  %v228 = vmax.f32 %v219, 0.0
  %v229 = vmax.f32 %v221, 0.0
  %v230 = vmax.f32 %v224, 0.0
  %v231 = vmax.f32 %v226, 0.0
  %v232 = vpack.c.bf16 %v228, %v228
  %v233 = vpack.c.bf16 %v229, %v229
  %v234 = vpack.c.bf16 %v230, %v230
  %v235 = vpack.c.bf16 %v231, %v231
  %236 = vst [vmem:[%s3] sm:$0xf] %v232
  %237 = vst [vmem:[%s3 + $0x4] sm:$0xf] %v233
  %238 = vst [vmem:[%s3 + $0x8] sm:$0xf] %v234
  %239 = vst [vmem:[%s3 + $0xc] sm:$0xf] %v235
  // Predicated region
  $region14: #{reinforce_atari_forward.4} parent=0 // pred_check
    _
  $region15: #{reinforce_atari_forward.4} parent=0 // pred_check_branch
    %241 = sbr.rel (0) target = $region17
  $region16: #{reinforce_atari_forward.4} parent=0 // pred_region
    _
  $region17: #{reinforce_atari_forward.4} parent=0 // pred_fallthru
    _
  // Predicated region
  $region18: #{reinforce_atari_forward.4} parent=0 // pred_check
    _
  $region19: #{reinforce_atari_forward.4} parent=0 // pred_check_branch
    %243 = sbr.rel (0) target = $region21
  $region20: #{reinforce_atari_forward.4} parent=0 // pred_region
    _
  $region21: #{reinforce_atari_forward.4} parent=0 // pred_fallthru
    _

// kernel: reinforce_atari_forward.5
$region0: #{reinforce_atari_forward.5}
  #allocation0 [shape = 'u32[]', space=smem, size = 0x4, offset = 0x4, fixed_abs, tag = 'smem constant byte address 0x4 - core index']
  #allocation1 [shape = 'u32[72,128]{1,0:T(1,128)}', space=vmem, size = 0x9000, scoped, tag = 'internal scratch']
  %s0 = inlined_call_operand.vmem [shape: bf16[2,2048], index: 0, kind: input, shape index: {}]
  %s1 = inlined_call_operand.vmem [shape: bf16[2048,128], index: 1, kind: input, shape index: {}]
  %s2 = inlined_call_operand.vmem [shape: f32[1,128], index: 2, kind: input, shape index: {}]
  %s3 = inlined_call_operand.vmem [shape: bf16[128,6], index: 3, kind: input, shape index: {}]
  %s4 = inlined_call_operand.vmem [shape: f32[1,6], index: 4, kind: input, shape index: {}]
  %s5 = inlined_call_operand.hbm [shape: f32[2,6], index: 5, kind: output, shape index: {}]
  %s6 = sld [smem:[#allocation0]]
  $region30: #{reinforce_atari_forward.5} parent=0
    _
  %s8 = ssub.s32 1, %s6
  %s9 = scalar_select 0, %s8, %s6
  $region1: #{reinforce_atari_forward.5} parent=0
    #allocation2 [shape = 'u8[1024]{0}', space=vmem, size = 0x400, scoped, tag = 'output window, operand 0, single buffered']
    #allocation3 [shape = 's32[1]{0}', space=sflag, size = 0x4, scoped, tag = 'scoped memory for reinforce_atari_forward.5']
    %10 = vsyncpa [#allocation3], 0
    // Predicated region
    $region2: #{reinforce_atari_forward.5} parent=1 // pred_check
      _
    $region3: #{reinforce_atari_forward.5} parent=1 // pred_check_branch
      %12 = sbr.rel (0) target = $region5
    $region4: #{reinforce_atari_forward.5} parent=1 // pred_region
      _
    $region5: #{reinforce_atari_forward.5} parent=1 // pred_fallthru
      _
    // Predicated region
    $region6: #{reinforce_atari_forward.5} parent=1 // pred_check
      _
    $region7: #{reinforce_atari_forward.5} parent=1 // pred_check_branch
      %14 = sbr.rel (0) target = $region9
    $region8: #{reinforce_atari_forward.5} parent=1 // pred_region
      _
    $region9: #{reinforce_atari_forward.5} parent=1 // pred_fallthru
      _
    // Predicated region
    $region10: #{reinforce_atari_forward.5} parent=1 // pred_check
      _
    $region11: #{reinforce_atari_forward.5} parent=1 // pred_check_branch
      %16 = sbr.rel (0) target = $region13
    $region12: #{reinforce_atari_forward.5} parent=1 // pred_region
      _
    $region13: #{reinforce_atari_forward.5} parent=1 // pred_fallthru
      _
    // Predicated region
    $region14: #{reinforce_atari_forward.5} parent=1 // pred_check
      _
    $region15: #{reinforce_atari_forward.5} parent=1 // pred_check_branch
      %18 = sbr.rel (0) target = $region17
    $region16: #{reinforce_atari_forward.5} parent=1 // pred_region
      _
    $region17: #{reinforce_atari_forward.5} parent=1 // pred_fallthru
      _
    // Predicated region
    $region18: #{reinforce_atari_forward.5} parent=1 // pred_check
      _
    $region19: #{reinforce_atari_forward.5} parent=1 // pred_check_branch
      %20 = sbr.rel (0) target = $region21
    $region20: #{reinforce_atari_forward.5} parent=1 // pred_region
      _
    $region21: #{reinforce_atari_forward.5} parent=1 // pred_fallthru
      _
    %v21 = vld [vmem:[%s0] sm:$0xff]
    %v22 = vld [vmem:[%s0 + $0x8] sm:$0xff]
    %v23 = vld [vmem:[%s1] sm:$0xf]
    %v24 = vld [vmem:[%s1 + $0x4] sm:$0xf]
    %v25 = vld [vmem:[%s1 + $0x8] sm:$0xf]
    %v26 = vld [vmem:[%s1 + $0xc] sm:$0xf]
    %v27 = vld [vmem:[%s1 + $0x10] sm:$0xf]
    %v28 = vld [vmem:[%s1 + $0x14] sm:$0xf]
    %v29 = vld [vmem:[%s1 + $0x18] sm:$0xf]
    %v30 = vld [vmem:[%s1 + $0x1c] sm:$0xf]
    %v31 = vld [vmem:[%s1 + $0x20] sm:$0xf]
    %v32 = vld [vmem:[%s1 + $0x24] sm:$0xf]
    %v33 = vld [vmem:[%s1 + $0x28] sm:$0xf]
    %v34 = vld [vmem:[%s1 + $0x2c] sm:$0xf]
    %v35 = vld [vmem:[%s1 + $0x30] sm:$0xf]
    %v36 = vld [vmem:[%s1 + $0x34] sm:$0xf]
    %v37 = vld [vmem:[%s1 + $0x38] sm:$0xf]
    %v38 = vld [vmem:[%s1 + $0x3c] sm:$0xf]
    %v39 = vld [vmem:[%s1 + $0x40] sm:$0xf]
    %v40 = vld [vmem:[%s1 + $0x44] sm:$0xf]
    %v41 = vld [vmem:[%s1 + $0x48] sm:$0xf]
    %v42 = vld [vmem:[%s1 + $0x4c] sm:$0xf]
    %v43 = vld [vmem:[%s1 + $0x50] sm:$0xf]
    %v44 = vld [vmem:[%s1 + $0x54] sm:$0xf]
    %v45 = vld [vmem:[%s1 + $0x58] sm:$0xf]
    %v46 = vld [vmem:[%s1 + $0x5c] sm:$0xf]
    %v47 = vld [vmem:[%s1 + $0x60] sm:$0xf]
    %v48 = vld [vmem:[%s1 + $0x64] sm:$0xf]
    %v49 = vld [vmem:[%s1 + $0x68] sm:$0xf]
    %v50 = vld [vmem:[%s1 + $0x6c] sm:$0xf]
    %v51 = vld [vmem:[%s1 + $0x70] sm:$0xf]
    %v52 = vld [vmem:[%s1 + $0x74] sm:$0xf]
    %v53 = vld [vmem:[%s1 + $0x78] sm:$0xf]
    %v54 = vld [vmem:[%s1 + $0x7c] sm:$0xf]
    %v55 = vld [vmem:[%s1 + $0x80] sm:$0xf]
    %v56 = vld [vmem:[%s1 + $0x84] sm:$0xf]
    %v57 = vld [vmem:[%s1 + $0x88] sm:$0xf]
    %v58 = vld [vmem:[%s1 + $0x8c] sm:$0xf]
    %v59 = vld [vmem:[%s1 + $0x90] sm:$0xf]
    %v60 = vld [vmem:[%s1 + $0x94] sm:$0xf]
    %v61 = vld [vmem:[%s1 + $0x98] sm:$0xf]
    %v62 = vld [vmem:[%s1 + $0x9c] sm:$0xf]
    %v63 = vld [vmem:[%s1 + $0xa0] sm:$0xf]
    %v64 = vld [vmem:[%s1 + $0xa4] sm:$0xf]
    %v65 = vld [vmem:[%s1 + $0xa8] sm:$0xf]
    %v66 = vld [vmem:[%s1 + $0xac] sm:$0xf]
    %v67 = vld [vmem:[%s1 + $0xb0] sm:$0xf]
    %v68 = vld [vmem:[%s1 + $0xb4] sm:$0xf]
    %v69 = vld [vmem:[%s1 + $0xb8] sm:$0xf]
    %v70 = vld [vmem:[%s1 + $0xbc] sm:$0xf]
    %v71 = vld [vmem:[%s1 + $0xc0] sm:$0xf]
    %v72 = vld [vmem:[%s1 + $0xc4] sm:$0xf]
    %v73 = vld [vmem:[%s1 + $0xc8] sm:$0xf]
    %v74 = vld [vmem:[%s1 + $0xcc] sm:$0xf]
    %v75 = vld [vmem:[%s1 + $0xd0] sm:$0xf]
    %v76 = vld [vmem:[%s1 + $0xd4] sm:$0xf]
    %v77 = vld [vmem:[%s1 + $0xd8] sm:$0xf]
    %v78 = vld [vmem:[%s1 + $0xdc] sm:$0xf]
    %v79 = vld [vmem:[%s1 + $0xe0] sm:$0xf]
    %v80 = vld [vmem:[%s1 + $0xe4] sm:$0xf]
    %v81 = vld [vmem:[%s1 + $0xe8] sm:$0xf]
    %v82 = vld [vmem:[%s1 + $0xec] sm:$0xf]
    %v83 = vld [vmem:[%s1 + $0xf0] sm:$0xf]
    %v84 = vld [vmem:[%s1 + $0xf4] sm:$0xf]
    %v85 = vld [vmem:[%s1 + $0xf8] sm:$0xf]
    %v86 = vld [vmem:[%s1 + $0xfc] sm:$0xf]
    %v87 = vld [vmem:[%s1 + $0x100] sm:$0xf]
    %v88 = vld [vmem:[%s1 + $0x104] sm:$0xf]
    %v89 = vld [vmem:[%s1 + $0x108] sm:$0xf]
    %v90 = vld [vmem:[%s1 + $0x10c] sm:$0xf]
    %v91 = vld [vmem:[%s1 + $0x110] sm:$0xf]
    %v92 = vld [vmem:[%s1 + $0x114] sm:$0xf]
    %v93 = vld [vmem:[%s1 + $0x118] sm:$0xf]
    %v94 = vld [vmem:[%s1 + $0x11c] sm:$0xf]
    %v95 = vld [vmem:[%s1 + $0x120] sm:$0xf]
    %v96 = vld [vmem:[%s1 + $0x124] sm:$0xf]
    %v97 = vld [vmem:[%s1 + $0x128] sm:$0xf]
    %v98 = vld [vmem:[%s1 + $0x12c] sm:$0xf]
    %v99 = vld [vmem:[%s1 + $0x130] sm:$0xf]
    %v100 = vld [vmem:[%s1 + $0x134] sm:$0xf]
    %v101 = vld [vmem:[%s1 + $0x138] sm:$0xf]
    %v102 = vld [vmem:[%s1 + $0x13c] sm:$0xf]
    %v103 = vld [vmem:[%s1 + $0x140] sm:$0xf]
    %v104 = vld [vmem:[%s1 + $0x144] sm:$0xf]
    %v105 = vld [vmem:[%s1 + $0x148] sm:$0xf]
    %v106 = vld [vmem:[%s1 + $0x14c] sm:$0xf]
    %v107 = vld [vmem:[%s1 + $0x150] sm:$0xf]
    %v108 = vld [vmem:[%s1 + $0x154] sm:$0xf]
    %v109 = vld [vmem:[%s1 + $0x158] sm:$0xf]
    %v110 = vld [vmem:[%s1 + $0x15c] sm:$0xf]
    %v111 = vld [vmem:[%s1 + $0x160] sm:$0xf]
    %v112 = vld [vmem:[%s1 + $0x164] sm:$0xf]
    %v113 = vld [vmem:[%s1 + $0x168] sm:$0xf]
    %v114 = vld [vmem:[%s1 + $0x16c] sm:$0xf]
    %v115 = vld [vmem:[%s1 + $0x170] sm:$0xf]
    %v116 = vld [vmem:[%s1 + $0x174] sm:$0xf]
    %v117 = vld [vmem:[%s1 + $0x178] sm:$0xf]
    %v118 = vld [vmem:[%s1 + $0x17c] sm:$0xf]
    %v119 = vld [vmem:[%s1 + $0x180] sm:$0xf]
    %v120 = vld [vmem:[%s1 + $0x184] sm:$0xf]
    %v121 = vld [vmem:[%s1 + $0x188] sm:$0xf]
    %v122 = vld [vmem:[%s1 + $0x18c] sm:$0xf]
    %v123 = vld [vmem:[%s1 + $0x190] sm:$0xf]
    %v124 = vld [vmem:[%s1 + $0x194] sm:$0xf]
    %v125 = vld [vmem:[%s1 + $0x198] sm:$0xf]
    %v126 = vld [vmem:[%s1 + $0x19c] sm:$0xf]
    %v127 = vld [vmem:[%s1 + $0x1a0] sm:$0xf]
    %v128 = vld [vmem:[%s1 + $0x1a4] sm:$0xf]
    %v129 = vld [vmem:[%s1 + $0x1a8] sm:$0xf]
    %v130 = vld [vmem:[%s1 + $0x1ac] sm:$0xf]
    %v131 = vld [vmem:[%s1 + $0x1b0] sm:$0xf]
    %v132 = vld [vmem:[%s1 + $0x1b4] sm:$0xf]
    %v133 = vld [vmem:[%s1 + $0x1b8] sm:$0xf]
    %v134 = vld [vmem:[%s1 + $0x1bc] sm:$0xf]
    %v135 = vld [vmem:[%s1 + $0x1c0] sm:$0xf]
    %v136 = vld [vmem:[%s1 + $0x1c4] sm:$0xf]
    %v137 = vld [vmem:[%s1 + $0x1c8] sm:$0xf]
    %v138 = vld [vmem:[%s1 + $0x1cc] sm:$0xf]
    %v139 = vld [vmem:[%s1 + $0x1d0] sm:$0xf]
    %v140 = vld [vmem:[%s1 + $0x1d4] sm:$0xf]
    %v141 = vld [vmem:[%s1 + $0x1d8] sm:$0xf]
    %v142 = vld [vmem:[%s1 + $0x1dc] sm:$0xf]
    %v143 = vld [vmem:[%s1 + $0x1e0] sm:$0xf]
    %v144 = vld [vmem:[%s1 + $0x1e4] sm:$0xf]
    %v145 = vld [vmem:[%s1 + $0x1e8] sm:$0xf]
    %v146 = vld [vmem:[%s1 + $0x1ec] sm:$0xf]
    %v147 = vld [vmem:[%s1 + $0x1f0] sm:$0xf]
    %v148 = vld [vmem:[%s1 + $0x1f4] sm:$0xf]
    %v149 = vld [vmem:[%s1 + $0x1f8] sm:$0xf]
    %v150 = vld [vmem:[%s1 + $0x1fc] sm:$0xf]
    %v151 = vld [vmem:[%s1 + $0x200] sm:$0xf]
    %v152 = vld [vmem:[%s1 + $0x204] sm:$0xf]
    %v153 = vld [vmem:[%s1 + $0x208] sm:$0xf]
    %v154 = vld [vmem:[%s1 + $0x20c] sm:$0xf]
    %v155 = vld [vmem:[%s1 + $0x210] sm:$0xf]
    %v156 = vld [vmem:[%s1 + $0x214] sm:$0xf]
    %v157 = vld [vmem:[%s1 + $0x218] sm:$0xf]
    %v158 = vld [vmem:[%s1 + $0x21c] sm:$0xf]
    %v159 = vld [vmem:[%s1 + $0x220] sm:$0xf]
    %v160 = vld [vmem:[%s1 + $0x224] sm:$0xf]
    %v161 = vld [vmem:[%s1 + $0x228] sm:$0xf]
    %v162 = vld [vmem:[%s1 + $0x22c] sm:$0xf]
    %v163 = vld [vmem:[%s1 + $0x230] sm:$0xf]
    %v164 = vld [vmem:[%s1 + $0x234] sm:$0xf]
    %v165 = vld [vmem:[%s1 + $0x238] sm:$0xf]
    %v166 = vld [vmem:[%s1 + $0x23c] sm:$0xf]
    %v167 = vld [vmem:[%s1 + $0x240] sm:$0xf]
    %v168 = vld [vmem:[%s1 + $0x244] sm:$0xf]
    %v169 = vld [vmem:[%s1 + $0x248] sm:$0xf]
    %v170 = vld [vmem:[%s1 + $0x24c] sm:$0xf]
    %v171 = vld [vmem:[%s1 + $0x250] sm:$0xf]
    %v172 = vld [vmem:[%s1 + $0x254] sm:$0xf]
    %v173 = vld [vmem:[%s1 + $0x258] sm:$0xf]
    %v174 = vld [vmem:[%s1 + $0x25c] sm:$0xf]
    %v175 = vld [vmem:[%s1 + $0x260] sm:$0xf]
    %v176 = vld [vmem:[%s1 + $0x264] sm:$0xf]
    %v177 = vld [vmem:[%s1 + $0x268] sm:$0xf]
    %v178 = vld [vmem:[%s1 + $0x26c] sm:$0xf]
    %v179 = vld [vmem:[%s1 + $0x270] sm:$0xf]
    %v180 = vld [vmem:[%s1 + $0x274] sm:$0xf]
    %v181 = vld [vmem:[%s1 + $0x278] sm:$0xf]
    %v182 = vld [vmem:[%s1 + $0x27c] sm:$0xf]
    %v183 = vld [vmem:[%s1 + $0x280] sm:$0xf]
    %v184 = vld [vmem:[%s1 + $0x284] sm:$0xf]
    %v185 = vld [vmem:[%s1 + $0x288] sm:$0xf]
    %v186 = vld [vmem:[%s1 + $0x28c] sm:$0xf]
    %v187 = vld [vmem:[%s1 + $0x290] sm:$0xf]
    %v188 = vld [vmem:[%s1 + $0x294] sm:$0xf]
    %v189 = vld [vmem:[%s1 + $0x298] sm:$0xf]
    %v190 = vld [vmem:[%s1 + $0x29c] sm:$0xf]
    %v191 = vld [vmem:[%s1 + $0x2a0] sm:$0xf]
    %v192 = vld [vmem:[%s1 + $0x2a4] sm:$0xf]
    %v193 = vld [vmem:[%s1 + $0x2a8] sm:$0xf]
    %v194 = vld [vmem:[%s1 + $0x2ac] sm:$0xf]
    %v195 = vld [vmem:[%s1 + $0x2b0] sm:$0xf]
    %v196 = vld [vmem:[%s1 + $0x2b4] sm:$0xf]
    %v197 = vld [vmem:[%s1 + $0x2b8] sm:$0xf]
    %v198 = vld [vmem:[%s1 + $0x2bc] sm:$0xf]
    %v199 = vld [vmem:[%s1 + $0x2c0] sm:$0xf]
    %v200 = vld [vmem:[%s1 + $0x2c4] sm:$0xf]
    %v201 = vld [vmem:[%s1 + $0x2c8] sm:$0xf]
    %v202 = vld [vmem:[%s1 + $0x2cc] sm:$0xf]
    %v203 = vld [vmem:[%s1 + $0x2d0] sm:$0xf]
    %v204 = vld [vmem:[%s1 + $0x2d4] sm:$0xf]
    %v205 = vld [vmem:[%s1 + $0x2d8] sm:$0xf]
    %v206 = vld [vmem:[%s1 + $0x2dc] sm:$0xf]
    %v207 = vld [vmem:[%s1 + $0x2e0] sm:$0xf]
    %v208 = vld [vmem:[%s1 + $0x2e4] sm:$0xf]
    %v209 = vld [vmem:[%s1 + $0x2e8] sm:$0xf]
    %v210 = vld [vmem:[%s1 + $0x2ec] sm:$0xf]
    %v211 = vld [vmem:[%s1 + $0x2f0] sm:$0xf]
    %v212 = vld [vmem:[%s1 + $0x2f4] sm:$0xf]
    %v213 = vld [vmem:[%s1 + $0x2f8] sm:$0xf]
    %v214 = vld [vmem:[%s1 + $0x2fc] sm:$0xf]
    %v215 = vld [vmem:[%s1 + $0x300] sm:$0xf]
    %v216 = vld [vmem:[%s1 + $0x304] sm:$0xf]
    %v217 = vld [vmem:[%s1 + $0x308] sm:$0xf]
    %v218 = vld [vmem:[%s1 + $0x30c] sm:$0xf]
    %v219 = vld [vmem:[%s1 + $0x310] sm:$0xf]
    %v220 = vld [vmem:[%s1 + $0x314] sm:$0xf]
    %v221 = vld [vmem:[%s1 + $0x318] sm:$0xf]
    %v222 = vld [vmem:[%s1 + $0x31c] sm:$0xf]
    %v223 = vld [vmem:[%s1 + $0x320] sm:$0xf]
    %v224 = vld [vmem:[%s1 + $0x324] sm:$0xf]
    %v225 = vld [vmem:[%s1 + $0x328] sm:$0xf]
    %v226 = vld [vmem:[%s1 + $0x32c] sm:$0xf]
    %v227 = vld [vmem:[%s1 + $0x330] sm:$0xf]
    %v228 = vld [vmem:[%s1 + $0x334] sm:$0xf]
    %v229 = vld [vmem:[%s1 + $0x338] sm:$0xf]
    %v230 = vld [vmem:[%s1 + $0x33c] sm:$0xf]
    %v231 = vld [vmem:[%s1 + $0x340] sm:$0xf]
    %v232 = vld [vmem:[%s1 + $0x344] sm:$0xf]
    %v233 = vld [vmem:[%s1 + $0x348] sm:$0xf]
    %v234 = vld [vmem:[%s1 + $0x34c] sm:$0xf]
    %v235 = vld [vmem:[%s1 + $0x350] sm:$0xf]
    %v236 = vld [vmem:[%s1 + $0x354] sm:$0xf]
    %v237 = vld [vmem:[%s1 + $0x358] sm:$0xf]
    %v238 = vld [vmem:[%s1 + $0x35c] sm:$0xf]
    %v239 = vld [vmem:[%s1 + $0x360] sm:$0xf]
    %v240 = vld [vmem:[%s1 + $0x364] sm:$0xf]
    %v241 = vld [vmem:[%s1 + $0x368] sm:$0xf]
    %v242 = vld [vmem:[%s1 + $0x36c] sm:$0xf]
    %v243 = vld [vmem:[%s1 + $0x370] sm:$0xf]
    %v244 = vld [vmem:[%s1 + $0x374] sm:$0xf]
    %v245 = vld [vmem:[%s1 + $0x378] sm:$0xf]
    %v246 = vld [vmem:[%s1 + $0x37c] sm:$0xf]
    %v247 = vld [vmem:[%s1 + $0x380] sm:$0xf]
    %v248 = vld [vmem:[%s1 + $0x384] sm:$0xf]
    %v249 = vld [vmem:[%s1 + $0x388] sm:$0xf]
    %v250 = vld [vmem:[%s1 + $0x38c] sm:$0xf]
    %v251 = vld [vmem:[%s1 + $0x390] sm:$0xf]
    %v252 = vld [vmem:[%s1 + $0x394] sm:$0xf]
    %v253 = vld [vmem:[%s1 + $0x398] sm:$0xf]
    %v254 = vld [vmem:[%s1 + $0x39c] sm:$0xf]
    %v255 = vld [vmem:[%s1 + $0x3a0] sm:$0xf]
    %v256 = vld [vmem:[%s1 + $0x3a4] sm:$0xf]
    %v257 = vld [vmem:[%s1 + $0x3a8] sm:$0xf]
    %v258 = vld [vmem:[%s1 + $0x3ac] sm:$0xf]
    %v259 = vld [vmem:[%s1 + $0x3b0] sm:$0xf]
    %v260 = vld [vmem:[%s1 + $0x3b4] sm:$0xf]
    %v261 = vld [vmem:[%s1 + $0x3b8] sm:$0xf]
    %v262 = vld [vmem:[%s1 + $0x3bc] sm:$0xf]
    %v263 = vld [vmem:[%s1 + $0x3c0] sm:$0xf]
    %v264 = vld [vmem:[%s1 + $0x3c4] sm:$0xf]
    %v265 = vld [vmem:[%s1 + $0x3c8] sm:$0xf]
    %v266 = vld [vmem:[%s1 + $0x3cc] sm:$0xf]
    %v267 = vld [vmem:[%s1 + $0x3d0] sm:$0xf]
    %v268 = vld [vmem:[%s1 + $0x3d4] sm:$0xf]
    %v269 = vld [vmem:[%s1 + $0x3d8] sm:$0xf]
    %v270 = vld [vmem:[%s1 + $0x3dc] sm:$0xf]
    %v271 = vld [vmem:[%s1 + $0x3e0] sm:$0xf]
    %v272 = vld [vmem:[%s1 + $0x3e4] sm:$0xf]
    %v273 = vld [vmem:[%s1 + $0x3e8] sm:$0xf]
    %v274 = vld [vmem:[%s1 + $0x3ec] sm:$0xf]
    %v275 = vld [vmem:[%s1 + $0x3f0] sm:$0xf]
    %v276 = vld [vmem:[%s1 + $0x3f4] sm:$0xf]
    %v277 = vld [vmem:[%s1 + $0x3f8] sm:$0xf]
    %v278 = vld [vmem:[%s1 + $0x3fc] sm:$0xf]
    %v279 = vld [vmem:[%s2] sm:$0x1]
    %v281 = vperm.slane %v279, 0
    %284 = vst [vmem:[#allocation1] ss:$9 sm:$0xff] %v21
    %v285 = vld [vmem:[#allocation1] sm:$0xff]
    %v286 = vld [vmem:[#allocation1 + $0x9] sm:$0xff]
    %v287 = vld [vmem:[#allocation1 + $0x12] sm:$0xff]
    %v288 = vld [vmem:[#allocation1 + $0x1b] sm:$0xff]
    %v289 = vld [vmem:[#allocation1 + $0x24] sm:$0xff]
    %v290 = vld [vmem:[#allocation1 + $0x2d] sm:$0xff]
    %v291 = vld [vmem:[#allocation1 + $0x36] sm:$0xff]
    %v292 = vld [vmem:[#allocation1 + $0x3f] sm:$0xff]
    %294 = vst [vmem:[#allocation1] ss:$9 sm:$0xff] %v22
    %v295 = vld [vmem:[#allocation1] sm:$0xff]
    %v296 = vld [vmem:[#allocation1 + $0x9] sm:$0xff]
    %v297 = vld [vmem:[#allocation1 + $0x12] sm:$0xff]
    %v298 = vld [vmem:[#allocation1 + $0x1b] sm:$0xff]
    %v299 = vld [vmem:[#allocation1 + $0x24] sm:$0xff]
    %v300 = vld [vmem:[#allocation1 + $0x2d] sm:$0xff]
    %v301 = vld [vmem:[#allocation1 + $0x36] sm:$0xff]
    %v302 = vld [vmem:[#allocation1 + $0x3f] sm:$0xff]
    %v575 = vunpack.c.l.b16 %v23
    %v576 = vunpack.c.l.b16 %v24
    %v577 = vunpack.c.l.b16 %v25
    %v578 = vunpack.c.l.b16 %v26
    %v579 = vunpack.c.l.b16 %v27
    %v580 = vunpack.c.l.b16 %v28
    %v581 = vunpack.c.l.b16 %v29
    %v582 = vunpack.c.l.b16 %v30
    %v583 = vunpack.c.l.b16 %v31
    %v584 = vunpack.c.l.b16 %v32
    %v585 = vunpack.c.l.b16 %v33
    %v586 = vunpack.c.l.b16 %v34
    %v587 = vunpack.c.l.b16 %v35
    %v588 = vunpack.c.l.b16 %v36
    %v589 = vunpack.c.l.b16 %v37
    %v590 = vunpack.c.l.b16 %v38
    %v591 = vunpack.c.l.b16 %v39
    %v592 = vunpack.c.l.b16 %v40
    %v593 = vunpack.c.l.b16 %v41
    %v594 = vunpack.c.l.b16 %v42
    %v595 = vunpack.c.l.b16 %v43
    %v596 = vunpack.c.l.b16 %v44
    %v597 = vunpack.c.l.b16 %v45
    %v598 = vunpack.c.l.b16 %v46
    %v599 = vunpack.c.l.b16 %v47
    %v600 = vunpack.c.l.b16 %v48
    %v601 = vunpack.c.l.b16 %v49
    %v602 = vunpack.c.l.b16 %v50
    %v603 = vunpack.c.l.b16 %v51
    %v604 = vunpack.c.l.b16 %v52
    %v605 = vunpack.c.l.b16 %v53
    %v606 = vunpack.c.l.b16 %v54
    %v607 = vunpack.c.l.b16 %v55
    %v608 = vunpack.c.l.b16 %v56
    %v609 = vunpack.c.l.b16 %v57
    %v610 = vunpack.c.l.b16 %v58
    %v611 = vunpack.c.l.b16 %v59
    %v612 = vunpack.c.l.b16 %v60
    %v613 = vunpack.c.l.b16 %v61
    %v614 = vunpack.c.l.b16 %v62
    %v615 = vunpack.c.l.b16 %v63
    %v616 = vunpack.c.l.b16 %v64
    %v617 = vunpack.c.l.b16 %v65
    %v618 = vunpack.c.l.b16 %v66
    %v619 = vunpack.c.l.b16 %v67
    %v620 = vunpack.c.l.b16 %v68
    %v621 = vunpack.c.l.b16 %v69
    %v622 = vunpack.c.l.b16 %v70
    %v623 = vunpack.c.l.b16 %v71
    %v624 = vunpack.c.l.b16 %v72
    %v625 = vunpack.c.l.b16 %v73
    %v626 = vunpack.c.l.b16 %v74
    %v627 = vunpack.c.l.b16 %v75
    %v628 = vunpack.c.l.b16 %v76
    %v629 = vunpack.c.l.b16 %v77
    %v630 = vunpack.c.l.b16 %v78
    %v631 = vunpack.c.l.b16 %v79
    %v632 = vunpack.c.l.b16 %v80
    %v633 = vunpack.c.l.b16 %v81
    %v634 = vunpack.c.l.b16 %v82
    %v635 = vunpack.c.l.b16 %v83
    %v636 = vunpack.c.l.b16 %v84
    %v637 = vunpack.c.l.b16 %v85
    %v638 = vunpack.c.l.b16 %v86
    %v639 = vunpack.c.l.b16 %v87
    %v640 = vunpack.c.l.b16 %v88
    %v641 = vunpack.c.l.b16 %v89
    %v642 = vunpack.c.l.b16 %v90
    %v643 = vunpack.c.l.b16 %v91
    %v644 = vunpack.c.l.b16 %v92
    %v645 = vunpack.c.l.b16 %v93
    %v646 = vunpack.c.l.b16 %v94
    %v647 = vunpack.c.l.b16 %v95
    %v648 = vunpack.c.l.b16 %v96
    %v649 = vunpack.c.l.b16 %v97
    %v650 = vunpack.c.l.b16 %v98
    %v651 = vunpack.c.l.b16 %v99
    %v652 = vunpack.c.l.b16 %v100
    %v653 = vunpack.c.l.b16 %v101
    %v654 = vunpack.c.l.b16 %v102
    %v655 = vunpack.c.l.b16 %v103
    %v656 = vunpack.c.l.b16 %v104
    %v657 = vunpack.c.l.b16 %v105
    %v658 = vunpack.c.l.b16 %v106
    %v659 = vunpack.c.l.b16 %v107
    %v660 = vunpack.c.l.b16 %v108
    %v661 = vunpack.c.l.b16 %v109
    %v662 = vunpack.c.l.b16 %v110
    %v663 = vunpack.c.l.b16 %v111
    %v664 = vunpack.c.l.b16 %v112
    %v665 = vunpack.c.l.b16 %v113
    %v666 = vunpack.c.l.b16 %v114
    %v667 = vunpack.c.l.b16 %v115
    %v668 = vunpack.c.l.b16 %v116
    %v669 = vunpack.c.l.b16 %v117
    %v670 = vunpack.c.l.b16 %v118
    %v671 = vunpack.c.l.b16 %v119
    %v672 = vunpack.c.l.b16 %v120
    %v673 = vunpack.c.l.b16 %v121
    %v674 = vunpack.c.l.b16 %v122
    %v675 = vunpack.c.l.b16 %v123
    %v676 = vunpack.c.l.b16 %v124
    %v677 = vunpack.c.l.b16 %v125
    %v678 = vunpack.c.l.b16 %v126
    %v679 = vunpack.c.l.b16 %v127
    %v680 = vunpack.c.l.b16 %v128
    %v681 = vunpack.c.l.b16 %v129
    %v682 = vunpack.c.l.b16 %v130
    %v683 = vunpack.c.l.b16 %v131
    %v684 = vunpack.c.l.b16 %v132
    %v685 = vunpack.c.l.b16 %v133
    %v686 = vunpack.c.l.b16 %v134
    %v687 = vunpack.c.l.b16 %v135
    %v688 = vunpack.c.l.b16 %v136
    %v689 = vunpack.c.l.b16 %v137
    %v690 = vunpack.c.l.b16 %v138
    %v691 = vunpack.c.l.b16 %v139
    %v692 = vunpack.c.l.b16 %v140
    %v693 = vunpack.c.l.b16 %v141
    %v694 = vunpack.c.l.b16 %v142
    %v695 = vunpack.c.l.b16 %v143
    %v696 = vunpack.c.l.b16 %v144
    %v697 = vunpack.c.l.b16 %v145
    %v698 = vunpack.c.l.b16 %v146
    %v699 = vunpack.c.l.b16 %v147
    %v700 = vunpack.c.l.b16 %v148
    %v701 = vunpack.c.l.b16 %v149
    %v702 = vunpack.c.l.b16 %v150
    %v703 = vunpack.c.l.b16 %v151
    %v704 = vunpack.c.l.b16 %v152
    %v705 = vunpack.c.l.b16 %v153
    %v706 = vunpack.c.l.b16 %v154
    %v707 = vunpack.c.l.b16 %v155
    %v708 = vunpack.c.l.b16 %v156
    %v709 = vunpack.c.l.b16 %v157
    %v710 = vunpack.c.l.b16 %v158
    %v711 = vunpack.c.l.b16 %v159
    %v712 = vunpack.c.l.b16 %v160
    %v713 = vunpack.c.l.b16 %v161
    %v714 = vunpack.c.l.b16 %v162
    %v715 = vunpack.c.l.b16 %v163
    %v716 = vunpack.c.l.b16 %v164
    %v717 = vunpack.c.l.b16 %v165
    %v718 = vunpack.c.l.b16 %v166
    %v719 = vunpack.c.l.b16 %v167
    %v720 = vunpack.c.l.b16 %v168
    %v721 = vunpack.c.l.b16 %v169
    %v722 = vunpack.c.l.b16 %v170
    %v723 = vunpack.c.l.b16 %v171
    %v724 = vunpack.c.l.b16 %v172
    %v725 = vunpack.c.l.b16 %v173
    %v726 = vunpack.c.l.b16 %v174
    %v727 = vunpack.c.l.b16 %v175
    %v728 = vunpack.c.l.b16 %v176
    %v729 = vunpack.c.l.b16 %v177
    %v730 = vunpack.c.l.b16 %v178
    %v731 = vunpack.c.l.b16 %v179
    %v732 = vunpack.c.l.b16 %v180
    %v733 = vunpack.c.l.b16 %v181
    %v734 = vunpack.c.l.b16 %v182
    %v735 = vunpack.c.l.b16 %v183
    %v736 = vunpack.c.l.b16 %v184
    %v737 = vunpack.c.l.b16 %v185
    %v738 = vunpack.c.l.b16 %v186
    %v739 = vunpack.c.l.b16 %v187
    %v740 = vunpack.c.l.b16 %v188
    %v741 = vunpack.c.l.b16 %v189
    %v742 = vunpack.c.l.b16 %v190
    %v743 = vunpack.c.l.b16 %v191
    %v744 = vunpack.c.l.b16 %v192
    %v745 = vunpack.c.l.b16 %v193
    %v746 = vunpack.c.l.b16 %v194
    %v747 = vunpack.c.l.b16 %v195
    %v748 = vunpack.c.l.b16 %v196
    %v749 = vunpack.c.l.b16 %v197
    %v750 = vunpack.c.l.b16 %v198
    %v751 = vunpack.c.l.b16 %v199
    %v752 = vunpack.c.l.b16 %v200
    %v753 = vunpack.c.l.b16 %v201
    %v754 = vunpack.c.l.b16 %v202
    %v755 = vunpack.c.l.b16 %v203
    %v756 = vunpack.c.l.b16 %v204
    %v757 = vunpack.c.l.b16 %v205
    %v758 = vunpack.c.l.b16 %v206
    %v759 = vunpack.c.l.b16 %v207
    %v760 = vunpack.c.l.b16 %v208
    %v761 = vunpack.c.l.b16 %v209
    %v762 = vunpack.c.l.b16 %v210
    %v763 = vunpack.c.l.b16 %v211
    %v764 = vunpack.c.l.b16 %v212
    %v765 = vunpack.c.l.b16 %v213
    %v766 = vunpack.c.l.b16 %v214
    %v767 = vunpack.c.l.b16 %v215
    %v768 = vunpack.c.l.b16 %v216
    %v769 = vunpack.c.l.b16 %v217
    %v770 = vunpack.c.l.b16 %v218
    %v771 = vunpack.c.l.b16 %v219
    %v772 = vunpack.c.l.b16 %v220
    %v773 = vunpack.c.l.b16 %v221
    %v774 = vunpack.c.l.b16 %v222
    %v775 = vunpack.c.l.b16 %v223
    %v776 = vunpack.c.l.b16 %v224
    %v777 = vunpack.c.l.b16 %v225
    %v778 = vunpack.c.l.b16 %v226
    %v779 = vunpack.c.l.b16 %v227
    %v780 = vunpack.c.l.b16 %v228
    %v781 = vunpack.c.l.b16 %v229
    %v782 = vunpack.c.l.b16 %v230
    %v783 = vunpack.c.l.b16 %v231
    %v784 = vunpack.c.l.b16 %v232
    %v785 = vunpack.c.l.b16 %v233
    %v786 = vunpack.c.l.b16 %v234
    %v787 = vunpack.c.l.b16 %v235
    %v788 = vunpack.c.l.b16 %v236
    %v789 = vunpack.c.l.b16 %v237
    %v790 = vunpack.c.l.b16 %v238
    %v791 = vunpack.c.l.b16 %v239
    %v792 = vunpack.c.l.b16 %v240
    %v793 = vunpack.c.l.b16 %v241
    %v794 = vunpack.c.l.b16 %v242
    %v795 = vunpack.c.l.b16 %v243
    %v796 = vunpack.c.l.b16 %v244
    %v797 = vunpack.c.l.b16 %v245
    %v798 = vunpack.c.l.b16 %v246
    %v799 = vunpack.c.l.b16 %v247
    %v800 = vunpack.c.l.b16 %v248
    %v801 = vunpack.c.l.b16 %v249
    %v802 = vunpack.c.l.b16 %v250
    %v803 = vunpack.c.l.b16 %v251
    %v804 = vunpack.c.l.b16 %v252
    %v805 = vunpack.c.l.b16 %v253
    %v806 = vunpack.c.l.b16 %v254
    %v807 = vunpack.c.l.b16 %v255
    %v808 = vunpack.c.l.b16 %v256
    %v809 = vunpack.c.l.b16 %v257
    %v810 = vunpack.c.l.b16 %v258
    %v811 = vunpack.c.l.b16 %v259
    %v812 = vunpack.c.l.b16 %v260
    %v813 = vunpack.c.l.b16 %v261
    %v814 = vunpack.c.l.b16 %v262
    %v815 = vunpack.c.l.b16 %v263
    %v816 = vunpack.c.l.b16 %v264
    %v817 = vunpack.c.l.b16 %v265
    %v818 = vunpack.c.l.b16 %v266
    %v819 = vunpack.c.l.b16 %v267
    %v820 = vunpack.c.l.b16 %v268
    %v821 = vunpack.c.l.b16 %v269
    %v822 = vunpack.c.l.b16 %v270
    %v823 = vunpack.c.l.b16 %v271
    %v824 = vunpack.c.l.b16 %v272
    %v825 = vunpack.c.l.b16 %v273
    %v826 = vunpack.c.l.b16 %v274
    %v827 = vunpack.c.l.b16 %v275
    %v828 = vunpack.c.l.b16 %v276
    %v829 = vunpack.c.l.b16 %v277
    %v830 = vunpack.c.l.b16 %v278
    %v831 = vpack.c.b16 %v576, %v575
    %v832 = vpack.c.b16 %v578, %v577
    %v833 = vpack.c.b16 %v580, %v579
    %v834 = vpack.c.b16 %v582, %v581
    %v835 = vpack.c.b16 %v584, %v583
    %v836 = vpack.c.b16 %v586, %v585
    %v837 = vpack.c.b16 %v588, %v587
    %v838 = vpack.c.b16 %v590, %v589
    %v839 = vpack.c.b16 %v592, %v591
    %v840 = vpack.c.b16 %v594, %v593
    %v841 = vpack.c.b16 %v596, %v595
    %v842 = vpack.c.b16 %v598, %v597
    %v843 = vpack.c.b16 %v600, %v599
    %v844 = vpack.c.b16 %v602, %v601
    %v845 = vpack.c.b16 %v604, %v603
    %v846 = vpack.c.b16 %v606, %v605
    %v847 = vpack.c.b16 %v608, %v607
    %v848 = vpack.c.b16 %v610, %v609
    %v849 = vpack.c.b16 %v612, %v611
    %v850 = vpack.c.b16 %v614, %v613
    %v851 = vpack.c.b16 %v616, %v615
    %v852 = vpack.c.b16 %v618, %v617
    %v853 = vpack.c.b16 %v620, %v619
    %v854 = vpack.c.b16 %v622, %v621
    %v855 = vpack.c.b16 %v624, %v623
    %v856 = vpack.c.b16 %v626, %v625
    %v857 = vpack.c.b16 %v628, %v627
    %v858 = vpack.c.b16 %v630, %v629
    %v859 = vpack.c.b16 %v632, %v631
    %v860 = vpack.c.b16 %v634, %v633
    %v861 = vpack.c.b16 %v636, %v635
    %v862 = vpack.c.b16 %v638, %v637
    %v863 = vpack.c.b16 %v640, %v639
    %v864 = vpack.c.b16 %v642, %v641
    %v865 = vpack.c.b16 %v644, %v643
    %v866 = vpack.c.b16 %v646, %v645
    %v867 = vpack.c.b16 %v648, %v647
    %v868 = vpack.c.b16 %v650, %v649
    %v869 = vpack.c.b16 %v652, %v651
    %v870 = vpack.c.b16 %v654, %v653
    %v871 = vpack.c.b16 %v656, %v655
    %v872 = vpack.c.b16 %v658, %v657
    %v873 = vpack.c.b16 %v660, %v659
    %v874 = vpack.c.b16 %v662, %v661
    %v875 = vpack.c.b16 %v664, %v663
    %v876 = vpack.c.b16 %v666, %v665
    %v877 = vpack.c.b16 %v668, %v667
    %v878 = vpack.c.b16 %v670, %v669
    %v879 = vpack.c.b16 %v672, %v671
    %v880 = vpack.c.b16 %v674, %v673
    %v881 = vpack.c.b16 %v676, %v675
    %v882 = vpack.c.b16 %v678, %v677
    %v883 = vpack.c.b16 %v680, %v679
    %v884 = vpack.c.b16 %v682, %v681
    %v885 = vpack.c.b16 %v684, %v683
    %v886 = vpack.c.b16 %v686, %v685
    %v887 = vpack.c.b16 %v688, %v687
    %v888 = vpack.c.b16 %v690, %v689
    %v889 = vpack.c.b16 %v692, %v691
    %v890 = vpack.c.b16 %v694, %v693
    %v891 = vpack.c.b16 %v696, %v695
    %v892 = vpack.c.b16 %v698, %v697
    %v893 = vpack.c.b16 %v700, %v699
    %v894 = vpack.c.b16 %v702, %v701
    %v895 = vpack.c.b16 %v704, %v703
    %v896 = vpack.c.b16 %v706, %v705
    %v897 = vpack.c.b16 %v708, %v707
    %v898 = vpack.c.b16 %v710, %v709
    %v899 = vpack.c.b16 %v712, %v711
    %v900 = vpack.c.b16 %v714, %v713
    %v901 = vpack.c.b16 %v716, %v715
    %v902 = vpack.c.b16 %v718, %v717
    %v903 = vpack.c.b16 %v720, %v719
    %v904 = vpack.c.b16 %v722, %v721
    %v905 = vpack.c.b16 %v724, %v723
    %v906 = vpack.c.b16 %v726, %v725
    %v907 = vpack.c.b16 %v728, %v727
    %v908 = vpack.c.b16 %v730, %v729
    %v909 = vpack.c.b16 %v732, %v731
    %v910 = vpack.c.b16 %v734, %v733
    %v911 = vpack.c.b16 %v736, %v735
    %v912 = vpack.c.b16 %v738, %v737
    %v913 = vpack.c.b16 %v740, %v739
    %v914 = vpack.c.b16 %v742, %v741
    %v915 = vpack.c.b16 %v744, %v743
    %v916 = vpack.c.b16 %v746, %v745
    %v917 = vpack.c.b16 %v748, %v747
    %v918 = vpack.c.b16 %v750, %v749
    %v919 = vpack.c.b16 %v752, %v751
    %v920 = vpack.c.b16 %v754, %v753
    %v921 = vpack.c.b16 %v756, %v755
    %v922 = vpack.c.b16 %v758, %v757
    %v923 = vpack.c.b16 %v760, %v759
    %v924 = vpack.c.b16 %v762, %v761
    %v925 = vpack.c.b16 %v764, %v763
    %v926 = vpack.c.b16 %v766, %v765
    %v927 = vpack.c.b16 %v768, %v767
    %v928 = vpack.c.b16 %v770, %v769
    %v929 = vpack.c.b16 %v772, %v771
    %v930 = vpack.c.b16 %v774, %v773
    %v931 = vpack.c.b16 %v776, %v775
    %v932 = vpack.c.b16 %v778, %v777
    %v933 = vpack.c.b16 %v780, %v779
    %v934 = vpack.c.b16 %v782, %v781
    %v935 = vpack.c.b16 %v784, %v783
    %v936 = vpack.c.b16 %v786, %v785
    %v937 = vpack.c.b16 %v788, %v787
    %v938 = vpack.c.b16 %v790, %v789
    %v939 = vpack.c.b16 %v792, %v791
    %v940 = vpack.c.b16 %v794, %v793
    %v941 = vpack.c.b16 %v796, %v795
    %v942 = vpack.c.b16 %v798, %v797
    %v943 = vpack.c.b16 %v800, %v799
    %v944 = vpack.c.b16 %v802, %v801
    %v945 = vpack.c.b16 %v804, %v803
    %v946 = vpack.c.b16 %v806, %v805
    %v947 = vpack.c.b16 %v808, %v807
    %v948 = vpack.c.b16 %v810, %v809
    %v949 = vpack.c.b16 %v812, %v811
    %v950 = vpack.c.b16 %v814, %v813
    %v951 = vpack.c.b16 %v816, %v815
    %v952 = vpack.c.b16 %v818, %v817
    %v953 = vpack.c.b16 %v820, %v819
    %v954 = vpack.c.b16 %v822, %v821
    %v955 = vpack.c.b16 %v824, %v823
    %v956 = vpack.c.b16 %v826, %v825
    %v957 = vpack.c.b16 %v828, %v827
    %v958 = vpack.c.b16 %v830, %v829
    %1087 = vmatpush.bf16.msra.mxu0 %v838
    %1088 = vmatpush.bf16.msra.mxu0 %v837
    %1089 = vmatpush.bf16.msra.mxu0 %v836
    %1090 = vmatpush.bf16.msra.mxu0 %v835
    %1091 = vmatpush.bf16.msra.mxu0 %v834
    %1092 = vmatpush.bf16.msra.mxu0 %v833
    %1093 = vmatpush.bf16.msra.mxu0 %v832
    %1094 = vmatpush.bf16.msra.mxu0 %v831
    %1095 = vmatmul.bf16.gmra.mxu0 %v285
    %v1096 = vpop.f32.mrf.mxu0
    %v1097 = vadd.f32 %v281, %v1096
    %v1098 = vpop.f32.mrf.mxu0
    %1099 = vdwg.mxu0
    %1100 = vmatpush.bf16.msra.mxu0 %v846
    %1101 = vmatpush.bf16.msra.mxu0 %v845
    %1102 = vmatpush.bf16.msra.mxu0 %v844
    %1103 = vmatpush.bf16.msra.mxu0 %v843
    %1104 = vmatpush.bf16.msra.mxu0 %v842
    %1105 = vmatpush.bf16.msra.mxu0 %v841
    %1106 = vmatpush.bf16.msra.mxu0 %v840
    %1107 = vmatpush.bf16.msra.mxu0 %v839
    %1108 = vmatmul.bf16.gmra.mxu0 %v286
    %v1109 = vpop.f32.mrf.mxu0
    %v1110 = vadd.f32 %v1097, %v1109
    %v1111 = vpop.f32.mrf.mxu0
    %1112 = vdwg.mxu0
    %1113 = vmatpush.bf16.msra.mxu0 %v854
    %1114 = vmatpush.bf16.msra.mxu0 %v853
    %1115 = vmatpush.bf16.msra.mxu0 %v852
    %1116 = vmatpush.bf16.msra.mxu0 %v851
    %1117 = vmatpush.bf16.msra.mxu0 %v850
    %1118 = vmatpush.bf16.msra.mxu0 %v849
    %1119 = vmatpush.bf16.msra.mxu0 %v848
    %1120 = vmatpush.bf16.msra.mxu0 %v847
    %1121 = vmatmul.bf16.gmra.mxu0 %v287
    %v1122 = vpop.f32.mrf.mxu0
    %v1123 = vadd.f32 %v1110, %v1122
    %v1124 = vpop.f32.mrf.mxu0
    %1125 = vdwg.mxu0
    %1126 = vmatpush.bf16.msra.mxu0 %v862
    %1127 = vmatpush.bf16.msra.mxu0 %v861
    %1128 = vmatpush.bf16.msra.mxu0 %v860
    %1129 = vmatpush.bf16.msra.mxu0 %v859
    %1130 = vmatpush.bf16.msra.mxu0 %v858
    %1131 = vmatpush.bf16.msra.mxu0 %v857
    %1132 = vmatpush.bf16.msra.mxu0 %v856
    %1133 = vmatpush.bf16.msra.mxu0 %v855
    %1134 = vmatmul.bf16.gmra.mxu0 %v288
    %v1135 = vpop.f32.mrf.mxu0
    %v1136 = vadd.f32 %v1123, %v1135
    %v1137 = vpop.f32.mrf.mxu0
    %1138 = vdwg.mxu0
    %1139 = vmatpush.bf16.msra.mxu0 %v870
    %1140 = vmatpush.bf16.msra.mxu0 %v869
    %1141 = vmatpush.bf16.msra.mxu0 %v868
    %1142 = vmatpush.bf16.msra.mxu0 %v867
    %1143 = vmatpush.bf16.msra.mxu0 %v866
    %1144 = vmatpush.bf16.msra.mxu0 %v865
    %1145 = vmatpush.bf16.msra.mxu0 %v864
    %1146 = vmatpush.bf16.msra.mxu0 %v863
    %1147 = vmatmul.bf16.gmra.mxu0 %v289
    %v1148 = vpop.f32.mrf.mxu0
    %v1149 = vadd.f32 %v1136, %v1148
    %v1150 = vpop.f32.mrf.mxu0
    %1151 = vdwg.mxu0
    %1152 = vmatpush.bf16.msra.mxu0 %v878
    %1153 = vmatpush.bf16.msra.mxu0 %v877
    %1154 = vmatpush.bf16.msra.mxu0 %v876
    %1155 = vmatpush.bf16.msra.mxu0 %v875
    %1156 = vmatpush.bf16.msra.mxu0 %v874
    %1157 = vmatpush.bf16.msra.mxu0 %v873
    %1158 = vmatpush.bf16.msra.mxu0 %v872
    %1159 = vmatpush.bf16.msra.mxu0 %v871
    %1160 = vmatmul.bf16.gmra.mxu0 %v290
    %v1161 = vpop.f32.mrf.mxu0
    %v1162 = vadd.f32 %v1149, %v1161
    %v1163 = vpop.f32.mrf.mxu0
    %1164 = vdwg.mxu0
    %1165 = vmatpush.bf16.msra.mxu0 %v886
    %1166 = vmatpush.bf16.msra.mxu0 %v885
    %1167 = vmatpush.bf16.msra.mxu0 %v884
    %1168 = vmatpush.bf16.msra.mxu0 %v883
    %1169 = vmatpush.bf16.msra.mxu0 %v882
    %1170 = vmatpush.bf16.msra.mxu0 %v881
    %1171 = vmatpush.bf16.msra.mxu0 %v880
    %1172 = vmatpush.bf16.msra.mxu0 %v879
    %1173 = vmatmul.bf16.gmra.mxu0 %v291
    %v1174 = vpop.f32.mrf.mxu0
    %v1175 = vadd.f32 %v1162, %v1174
    %v1176 = vpop.f32.mrf.mxu0
    %1177 = vdwg.mxu0
    %1178 = vmatpush.bf16.msra.mxu0 %v894
    %1179 = vmatpush.bf16.msra.mxu0 %v893
    %1180 = vmatpush.bf16.msra.mxu0 %v892
    %1181 = vmatpush.bf16.msra.mxu0 %v891
    %1182 = vmatpush.bf16.msra.mxu0 %v890
    %1183 = vmatpush.bf16.msra.mxu0 %v889
    %1184 = vmatpush.bf16.msra.mxu0 %v888
    %1185 = vmatpush.bf16.msra.mxu0 %v887
    %1186 = vmatmul.bf16.gmra.mxu0 %v292
    %v1187 = vpop.f32.mrf.mxu0
    %v1188 = vadd.f32 %v1175, %v1187
    %v1189 = vpop.f32.mrf.mxu0
    %1190 = vdwg.mxu0
    %1191 = vmatpush.bf16.msra.mxu0 %v902
    %1192 = vmatpush.bf16.msra.mxu0 %v901
    %1193 = vmatpush.bf16.msra.mxu0 %v900
    %1194 = vmatpush.bf16.msra.mxu0 %v899
    %1195 = vmatpush.bf16.msra.mxu0 %v898
    %1196 = vmatpush.bf16.msra.mxu0 %v897
    %1197 = vmatpush.bf16.msra.mxu0 %v896
    %1198 = vmatpush.bf16.msra.mxu0 %v895
    %1199 = vmatmul.bf16.gmra.mxu0 %v295
    %v1200 = vpop.f32.mrf.mxu0
    %v1201 = vadd.f32 %v1188, %v1200
    %v1202 = vpop.f32.mrf.mxu0
    %1203 = vdwg.mxu0
    %1204 = vmatpush.bf16.msra.mxu0 %v910
    %1205 = vmatpush.bf16.msra.mxu0 %v909
    %1206 = vmatpush.bf16.msra.mxu0 %v908
    %1207 = vmatpush.bf16.msra.mxu0 %v907
    %1208 = vmatpush.bf16.msra.mxu0 %v906
    %1209 = vmatpush.bf16.msra.mxu0 %v905
    %1210 = vmatpush.bf16.msra.mxu0 %v904
    %1211 = vmatpush.bf16.msra.mxu0 %v903
    %1212 = vmatmul.bf16.gmra.mxu0 %v296
    %v1213 = vpop.f32.mrf.mxu0
    %v1214 = vadd.f32 %v1201, %v1213
    %v1215 = vpop.f32.mrf.mxu0
    %1216 = vdwg.mxu0
    %1217 = vmatpush.bf16.msra.mxu0 %v918
    %1218 = vmatpush.bf16.msra.mxu0 %v917
    %1219 = vmatpush.bf16.msra.mxu0 %v916
    %1220 = vmatpush.bf16.msra.mxu0 %v915
    %1221 = vmatpush.bf16.msra.mxu0 %v914
    %1222 = vmatpush.bf16.msra.mxu0 %v913
    %1223 = vmatpush.bf16.msra.mxu0 %v912
    %1224 = vmatpush.bf16.msra.mxu0 %v911
    %1225 = vmatmul.bf16.gmra.mxu0 %v297
    %v1226 = vpop.f32.mrf.mxu0
    %v1227 = vadd.f32 %v1214, %v1226
    %v1228 = vpop.f32.mrf.mxu0
    %1229 = vdwg.mxu0
    %1230 = vmatpush.bf16.msra.mxu0 %v926
    %1231 = vmatpush.bf16.msra.mxu0 %v925
    %1232 = vmatpush.bf16.msra.mxu0 %v924
    %1233 = vmatpush.bf16.msra.mxu0 %v923
    %1234 = vmatpush.bf16.msra.mxu0 %v922
    %1235 = vmatpush.bf16.msra.mxu0 %v921
    %1236 = vmatpush.bf16.msra.mxu0 %v920
    %1237 = vmatpush.bf16.msra.mxu0 %v919
    %1238 = vmatmul.bf16.gmra.mxu0 %v298
    %v1239 = vpop.f32.mrf.mxu0
    %v1240 = vadd.f32 %v1227, %v1239
    %v1241 = vpop.f32.mrf.mxu0
    %1242 = vdwg.mxu0
    %1243 = vmatpush.bf16.msra.mxu0 %v934
    %1244 = vmatpush.bf16.msra.mxu0 %v933
    %1245 = vmatpush.bf16.msra.mxu0 %v932
    %1246 = vmatpush.bf16.msra.mxu0 %v931
    %1247 = vmatpush.bf16.msra.mxu0 %v930
    %1248 = vmatpush.bf16.msra.mxu0 %v929
    %1249 = vmatpush.bf16.msra.mxu0 %v928
    %1250 = vmatpush.bf16.msra.mxu0 %v927
    %1251 = vmatmul.bf16.gmra.mxu0 %v299
    %v1252 = vpop.f32.mrf.mxu0
    %v1253 = vadd.f32 %v1240, %v1252
    %v1254 = vpop.f32.mrf.mxu0
    %1255 = vdwg.mxu0
    %1256 = vmatpush.bf16.msra.mxu0 %v942
    %1257 = vmatpush.bf16.msra.mxu0 %v941
    %1258 = vmatpush.bf16.msra.mxu0 %v940
    %1259 = vmatpush.bf16.msra.mxu0 %v939
    %1260 = vmatpush.bf16.msra.mxu0 %v938
    %1261 = vmatpush.bf16.msra.mxu0 %v937
    %1262 = vmatpush.bf16.msra.mxu0 %v936
    %1263 = vmatpush.bf16.msra.mxu0 %v935
    %1264 = vmatmul.bf16.gmra.mxu0 %v300
    %v1265 = vpop.f32.mrf.mxu0
    %v1266 = vadd.f32 %v1253, %v1265
    %v1267 = vpop.f32.mrf.mxu0
    %1268 = vdwg.mxu0
    %1269 = vmatpush.bf16.msra.mxu0 %v950
    %1270 = vmatpush.bf16.msra.mxu0 %v949
    %1271 = vmatpush.bf16.msra.mxu0 %v948
    %1272 = vmatpush.bf16.msra.mxu0 %v947
    %1273 = vmatpush.bf16.msra.mxu0 %v946
    %1274 = vmatpush.bf16.msra.mxu0 %v945
    %1275 = vmatpush.bf16.msra.mxu0 %v944
    %1276 = vmatpush.bf16.msra.mxu0 %v943
    %1277 = vmatmul.bf16.gmra.mxu0 %v301
    %v1278 = vpop.f32.mrf.mxu0
    %v1279 = vadd.f32 %v1266, %v1278
    %v1280 = vpop.f32.mrf.mxu0
    %1281 = vdwg.mxu0
    %1282 = vmatpush.bf16.msra.mxu0 %v958
    %1283 = vmatpush.bf16.msra.mxu0 %v957
    %1284 = vmatpush.bf16.msra.mxu0 %v956
    %1285 = vmatpush.bf16.msra.mxu0 %v955
    %1286 = vmatpush.bf16.msra.mxu0 %v954
    %1287 = vmatpush.bf16.msra.mxu0 %v953
    %1288 = vmatpush.bf16.msra.mxu0 %v952
    %1289 = vmatpush.bf16.msra.mxu0 %v951
    %1290 = vmatmul.bf16.gmra.mxu0 %v302
    %v1291 = vpop.f32.mrf.mxu0
    %v1292 = vadd.f32 %v1279, %v1291
    %v1293 = vpop.f32.mrf.mxu0
    %1294 = vdwg.mxu0
    %v1295 = vmax.f32 %v1292, 0.0
    %v1296 = vpack.c.bf16 %v1295, %v1295
    %v1297 = vld [vmem:[%s3] sm:$0xf]
    %v1298 = vld [vmem:[%s3 + $0x4] sm:$0xf]
    %v1299 = vld [vmem:[%s3 + $0x8] sm:$0xf]
    %v1300 = vld [vmem:[%s3 + $0xc] sm:$0xf]
    %v1301 = vld [vmem:[%s3 + $0x10] sm:$0xf]
    %v1302 = vld [vmem:[%s3 + $0x14] sm:$0xf]
    %v1303 = vld [vmem:[%s3 + $0x18] sm:$0xf]
    %v1304 = vld [vmem:[%s3 + $0x1c] sm:$0xf]
    %v1305 = vld [vmem:[%s3 + $0x20] sm:$0xf]
    %v1306 = vld [vmem:[%s3 + $0x24] sm:$0xf]
    %v1307 = vld [vmem:[%s3 + $0x28] sm:$0xf]
    %v1308 = vld [vmem:[%s3 + $0x2c] sm:$0xf]
    %v1309 = vld [vmem:[%s3 + $0x30] sm:$0xf]
    %v1310 = vld [vmem:[%s3 + $0x34] sm:$0xf]
    %v1311 = vld [vmem:[%s3 + $0x38] sm:$0xf]
    %v1312 = vld [vmem:[%s3 + $0x3c] sm:$0xf]
    %v1313 = vld [vmem:[%s4] sm:$0x1]
    %v1315 = vperm.slane %v1313, 0
    %v1333 = vunpack.c.l.b16 %v1297
    %v1334 = vunpack.c.l.b16 %v1298
    %v1335 = vunpack.c.l.b16 %v1299
    %v1336 = vunpack.c.l.b16 %v1300
    %v1337 = vunpack.c.l.b16 %v1301
    %v1338 = vunpack.c.l.b16 %v1302
    %v1339 = vunpack.c.l.b16 %v1303
    %v1340 = vunpack.c.l.b16 %v1304
    %v1341 = vunpack.c.l.b16 %v1305
    %v1342 = vunpack.c.l.b16 %v1306
    %v1343 = vunpack.c.l.b16 %v1307
    %v1344 = vunpack.c.l.b16 %v1308
    %v1345 = vunpack.c.l.b16 %v1309
    %v1346 = vunpack.c.l.b16 %v1310
    %v1347 = vunpack.c.l.b16 %v1311
    %v1348 = vunpack.c.l.b16 %v1312
    %v1349 = vpack.c.b16 %v1334, %v1333
    %v1350 = vpack.c.b16 %v1336, %v1335
    %v1351 = vpack.c.b16 %v1338, %v1337
    %v1352 = vpack.c.b16 %v1340, %v1339
    %v1353 = vpack.c.b16 %v1342, %v1341
    %v1354 = vpack.c.b16 %v1344, %v1343
    %v1355 = vpack.c.b16 %v1346, %v1345
    %v1356 = vpack.c.b16 %v1348, %v1347
    %1365 = vmatpush.bf16.msra.mxu0 %v1356
    %1366 = vmatpush.bf16.msra.mxu0 %v1355
    %1367 = vmatpush.bf16.msra.mxu0 %v1354
    %1368 = vmatpush.bf16.msra.mxu0 %v1353
    %1369 = vmatpush.bf16.msra.mxu0 %v1352
    %1370 = vmatpush.bf16.msra.mxu0 %v1351
    %1371 = vmatpush.bf16.msra.mxu0 %v1350
    %1372 = vmatpush.bf16.msra.mxu0 %v1349
    %1373 = vmatmul.bf16.gmra.mxu0 %v1296
    %v1374 = vpop.f32.mrf.mxu0
    %v1375 = vadd.f32 %v1315, %v1374
    %v1376 = vpop.f32.mrf.mxu0
    %1377 = vdwg.mxu0
    %vm1378 = vcmask 41984
    %v1379 = vsel %vm1378, %v1375, -inf
    %1380 = vmax.xlane.f32.xlu0 %v1379
    %v1381 = vpop.xlane.xlu0 %1380
    %v1382 = vsub.f32 %v1375, %v1381
    %v1383 = vmul.f32 %v1382, 1.442695
    %v1384 = vpow.pop %v1383
    %v1385 = vsel %vm1378, %v1384, 0.0
    %1386 = vadd.xlane.f32.xlu0 %v1385
    %v1387 = vpop.xlane.xlu0 %1386
    %v1388 = vrcp.pop %v1387
    %v1389 = vmul.f32 %v1384, %v1388
    %1390 = vst.msk [vmem:[#allocation2] sm:$0x3] %vm1378, %v1389
    // Predicated region
    $region22: #{reinforce_atari_forward.5} parent=1 // pred_check
      _
    $region23: #{reinforce_atari_forward.5} parent=1 // pred_check_branch
      %1392 = sbr.rel (0) target = $region25
    $region24: #{reinforce_atari_forward.5} parent=1 // pred_region
      %1394 = vsyncadd [#allocation3], 0
      %s1396 = sshll.u32 [#allocation2], 4
      %s1397 = int_to_ptr.vmem [resolvable:$true] %s1396
      %s1398 = sshll.u32 %s5, 4
      %s1399 = int_to_ptr.hbm [resolvable:$true] %s1398
      %1401 = dma.vmem_to_hbm [thread:$0]  %s1397, 32, %s1399, [#allocation3]
    $region25: #{reinforce_atari_forward.5} parent=1 // pred_fallthru
      _
    // Predicated region
    $region26: #{reinforce_atari_forward.5} parent=1 // pred_check
      _
    $region27: #{reinforce_atari_forward.5} parent=1 // pred_check_branch
      %1403 = sbr.rel (0) target = $region29
    $region28: #{reinforce_atari_forward.5} parent=1 // pred_region
      %1405 = dma.done [#allocation3], 32
    $region29: #{reinforce_atari_forward.5} parent=1 // pred_fallthru
      _
    %1406 = vsyncpa [#allocation3], 1

</llo_original>
